<compile_context>
chip_gen: v7x
topology: tpu7x:2x2x1
jax: 0.10.0
libtpu: 0.0.40
codegen_flags: <defaults>
</compile_context>

<pallas_src>
import jax
import jax.numpy as jnp
from jax.experimental import pallas as pl
from jax.experimental.pallas import tpu as pltpu

# Small synthetic shapes (real model uses 3x96x96 crops, D = 27648).
N = 2                  # batch (number of detected faces)
C, H, W = 3, 32, 32    # cropped face image, NCHW
D = C * H * W          # flattened feature dim (3072)
HIDDEN = 128
OUT_RAW = 3            # [female_score, male_score, age_fraction]
OUT_LANES = 128        # lane-dense padded output width (col 0 = gender, col 1 = age)

MAX_TN = 128           # cap on the batch tile
MAX_TK = 8192          # cap on the K tile
K_UNIT = 512           # K padding / tiling granularity


def _round_up(x, m):
    return ((x + m - 1) // m) * m


def _choose_k_tiling(d, max_tk=MAX_TK, unit=K_UNIT):
    """Pad d to a multiple of `unit`; pick the largest TK <= max_tk dividing it."""
    d_pad = _round_up(d, unit)
    chunks = d_pad // unit
    best = 1
    for div in range(1, chunks + 1):
        if chunks % div == 0 and unit * div <= max_tk:
            best = div
    return d_pad, unit * best


def genderage_kernel(x_ref, w1_ref, b1_ref, w2_ref, b2_ref, out_ref, acc_ref):
    k = pl.program_id(1)

    @pl.when(k == 0)
    def _():
        acc_ref[...] = jnp.zeros_like(acc_ref)

    # bf16 inputs, f32 accumulation on the MXU.
    acc_ref[...] += jnp.dot(x_ref[...], w1_ref[...],
                            preferred_element_type=jnp.float32)

    @pl.when(k == pl.num_programs(1) - 1)
    def _():
        h = jnp.maximum(acc_ref[...] + b1_ref[...], 0.0)              # (TN, HIDDEN) f32
        logits = jnp.dot(h.astype(jnp.bfloat16), w2_ref[...],
                         preferred_element_type=jnp.float32)
        logits = logits + b2_ref[...]                                 # (TN, OUT_LANES) f32

        female = logits[:, 0:1]
        male = logits[:, 1:2]
        # gender = torch.argmax(out[:, :2], dim=1); tie -> index 0 (matches argmax).
        gender = (male > female).astype(jnp.int32)                    # (TN, 1)
        # age = (out[:, 2] * 100).round().int(); jnp.round matches torch's
        # round-half-to-even.
        age = jnp.round(logits[:, 2:3] * 100.0).astype(jnp.int32)     # (TN, 1)

        # Single lane-dense int32 output slab: col 0 = gender, col 1 = age.
        lane = jax.lax.broadcasted_iota(jnp.int32, out_ref.shape, 1)
        out_ref[...] = jnp.where(lane == 0, gender,
                                 jnp.where(lane == 1, age, 0))


def retinaface_genderage_forward(imgs, w1, b1, w2, b2):
    """imgs: (N, C, H, W) float — already-cropped faces.

    Returns dict with 'gender' (int32, (N,)) and 'age' (int32, (N,)).
    """
    # TODO(synk): InsightfaceBboxCropModel (bbox detection + 96x96 aligned crop)
    # and the real ONNX conv backbone have no specification here; inputs are
    # treated as already-cropped faces fed to a synthetic flatten->MLP head.
    # TODO(synk): at production, the flatten / f32->bf16 cast / pad of x below
    # should be fused into the crop producer rather than be standalone XLA ops.
    n = imgs.shape[0]
    d, hidden = w1.shape
    out_raw = w2.shape[1]

    x = imgs.astype(jnp.float32).reshape(n, -1)                       # NCHW row-major flatten
    assert x.shape[1] == d

    # K tiling: pad D to a multiple of 512; TK = largest multiple of 512 that
    # divides d_pad and is <= 8192 (production D=27648 -> TK=4608, 6 K steps).
    d_pad, tk = _choose_k_tiling(d)

    # Batch: a single tile covering the whole (padded) batch, capped at 128.
    # Padded to a multiple of 16 so the bf16 x tile uses full packed sublanes.
    if n <= MAX_TN:
        n_pad = max(_round_up(n, 16), 16)
        tn = n_pad
    else:
        tn = MAX_TN
        n_pad = _round_up(n, MAX_TN)

    x = jnp.pad(x, ((0, n_pad - n), (0, d_pad - d)))
    w1p = jnp.pad(w1.astype(jnp.float32), ((0, d_pad - d), (0, 0)))
    w2p = jnp.pad(w2.astype(jnp.float32).reshape(hidden, out_raw),
                  ((0, 0), (0, OUT_LANES - out_raw)))
    b1p = b1.astype(jnp.float32).reshape(1, hidden)
    b2p = jnp.pad(b2.astype(jnp.float32).reshape(1, out_raw),
                  ((0, 0), (0, OUT_LANES - out_raw)))

    x_bf = x.astype(jnp.bfloat16)
    w1_bf = w1p.astype(jnp.bfloat16)
    w2_bf = w2p.astype(jnp.bfloat16)

    num_batch_tiles = n_pad // tn
    grid = (num_batch_tiles, d_pad // tk)

    cost = pl.CostEstimate(
        flops=2 * n_pad * d_pad * hidden + 2 * n_pad * hidden * OUT_LANES,
        transcendentals=0,
        bytes_accessed=(x_bf.size * 2
                        + num_batch_tiles * (w1_bf.size * 2 + w2_bf.size * 2
                                             + b1p.size * 4 + b2p.size * 4)
                        + n_pad * OUT_LANES * 4),
    )

    out_slab = pl.pallas_call(
        genderage_kernel,
        grid=grid,
        in_specs=[
            pl.BlockSpec((tn, tk), lambda i, k: (i, k)),              # x tile
            pl.BlockSpec((tk, hidden), lambda i, k: (k, 0)),          # W1 K-tile (pipelined)
            pl.BlockSpec((1, hidden), lambda i, k: (0, 0)),           # b1
            pl.BlockSpec((hidden, OUT_LANES), lambda i, k: (0, 0)),   # W2 (lane-dense, zero-padded)
            pl.BlockSpec((1, OUT_LANES), lambda i, k: (0, 0)),        # b2
        ],
        out_specs=pl.BlockSpec((tn, OUT_LANES), lambda i, k: (i, 0)),  # resident across k
        out_shape=jax.ShapeDtypeStruct((n_pad, OUT_LANES), jnp.int32),
        scratch_shapes=[pltpu.VMEM((tn, hidden), jnp.float32)],
        compiler_params=pltpu.CompilerParams(
            dimension_semantics=("parallel", "arbitrary"),
            vmem_limit_bytes=32 * 1024 * 1024,
        ),
        cost_estimate=cost,
    )(x_bf, w1_bf, b1p, w2_bf, b2p)

    return {"gender": out_slab[:n, 0], "age": out_slab[:n, 1]}


def _reference(imgs, w1, b1, w2, b2):
    """Plain-JAX reference at the same (bf16-input, f32-accum) precision."""
    x = imgs.astype(jnp.float32).reshape(imgs.shape[0], -1).astype(jnp.bfloat16)
    h = jnp.dot(x, w1.astype(jnp.bfloat16), preferred_element_type=jnp.float32)
    h = jnp.maximum(h + b1.astype(jnp.float32).reshape(1, -1), 0.0)
    o = jnp.dot(h.astype(jnp.bfloat16), w2.astype(jnp.bfloat16),
                preferred_element_type=jnp.float32) + b2.astype(jnp.float32).reshape(1, -1)
    gender = jnp.argmax(o[:, :2], axis=1).astype(jnp.int32)
    age = jnp.round(o[:, 2] * 100.0).astype(jnp.int32)
    return gender, age


if __name__ == "__main__":
    key = jax.random.PRNGKey(0)
    k_img, k_w1, k_b1, k_w2, k_b2 = jax.random.split(key, 5)

    # Deterministic synthetic inputs and parameters.
    imgs = jax.random.uniform(k_img, (N, C, H, W), jnp.float32)        # NCHW, like PyTorch
    w1 = jax.random.normal(k_w1, (D, HIDDEN), jnp.float32) * 0.02
    b1 = jax.random.normal(k_b1, (1, HIDDEN), jnp.float32) * 0.01
    w2 = jax.random.normal(k_w2, (HIDDEN, OUT_RAW), jnp.float32) * 0.1
    b2 = jax.random.normal(k_b2, (1, OUT_RAW), jnp.float32) * 0.1

    out = retinaface_genderage_forward(imgs, w1, b1, w2, b2)
    gender = jax.block_until_ready(out["gender"])
    age = jax.block_until_ready(out["age"])

    # Sanity check against the plain-JAX reference (age gets +/-1 slack for
    # round-boundary sensitivity to accumulation order / tiling).
    ref_gender, ref_age = _reference(imgs, w1, b1, w2, b2)
    assert gender.shape == (N,) and gender.dtype == jnp.int32
    assert age.shape == (N,) and age.dtype == jnp.int32
    assert bool(jnp.all(gender == ref_gender))
    assert bool(jnp.all(jnp.abs(age - ref_age) <= 1))

    print("KERNEL_OK")
</pallas_src>

<mosaic_0001>
module attributes {stable_mosaic.version = 11 : i64} {
  func.func @genderage_kernel(%arg0: i32, %arg1: i32, %arg2: memref<16x3072xbf16, #tpu.memory_space<vmem>>, %arg3: memref<3072x128xbf16, #tpu.memory_space<vmem>>, %arg4: memref<1x128xf32, #tpu.memory_space<vmem>>, %arg5: memref<128x128xbf16, #tpu.memory_space<vmem>>, %arg6: memref<1x128xf32, #tpu.memory_space<vmem>>, %arg7: memref<16x128xi32, #tpu.memory_space<vmem>>, %arg8: memref<16x128xf32, #tpu.memory_space<vmem>>) attributes {dimension_semantics = [#tpu.dimension_semantics<parallel>, #tpu.dimension_semantics<arbitrary>], iteration_bounds = array<i64: 1, 1>, scalar_prefetch = 0 : i64, scratch_operands = 1 : i64, tpu.core_type = #tpu.core_type<tc>, window_params = [{transform_indices = @transform_0, window_bounds = array<i64: 16, 3072>}, {transform_indices = @transform_1, window_bounds = array<i64: 3072, 128>}, {pipeline_mode = #tpu.pipeline_mode<synchronous>, transform_indices = @transform_2, window_bounds = array<i64: 1, 128>}, {pipeline_mode = #tpu.pipeline_mode<synchronous>, transform_indices = @transform_3, window_bounds = array<i64: 128, 128>}, {pipeline_mode = #tpu.pipeline_mode<synchronous>, transform_indices = @transform_4, window_bounds = array<i64: 1, 128>}, {transform_indices = @transform_5, window_bounds = array<i64: 16, 128>}]} {
    %c0_i32 = arith.constant 0 : i32
    %0 = arith.cmpi eq, %arg1, %c0_i32 : i32
    %1 = arith.extui %0 : i1 to i32
    %c0_i32_0 = arith.constant 0 : i32
    %2 = arith.cmpi ne, %1, %c0_i32_0 : i32
    scf.if %2 {
      %cst_10 = arith.constant 0.000000e+00 : f32
      %12 = vector.broadcast %cst_10 : f32 to vector<16x128xf32>
      %c0_11 = arith.constant 0 : index
      %c0_12 = arith.constant 0 : index
      %13 = vector.load %arg8[%c0_11, %c0_12] : memref<16x128xf32, #tpu.memory_space<vmem>>, vector<16x128xf32>
      tpu.vector_store %arg8[%c0_11, %c0_12], %12 {strides = array<i32>} : memref<16x128xf32, #tpu.memory_space<vmem>>, vector<16x128xf32>,
    } else {
    }
    %c0 = arith.constant 0 : index
    %c0_1 = arith.constant 0 : index
    %3 = vector.load %arg8[%c0, %c0_1] : memref<16x128xf32, #tpu.memory_space<vmem>>, vector<16x128xf32>
    %c0_2 = arith.constant 0 : index
    %c0_3 = arith.constant 0 : index
    %4 = vector.load %arg2[%c0_2, %c0_3] : memref<16x3072xbf16, #tpu.memory_space<vmem>>, vector<16x3072xbf16>
    %c0_4 = arith.constant 0 : index
    %c0_5 = arith.constant 0 : index
    %5 = vector.load %arg3[%c0_4, %c0_5] : memref<3072x128xbf16, #tpu.memory_space<vmem>>, vector<3072x128xbf16>
    %cst = arith.constant dense<0.000000e+00> : vector<16x128xf32>
    %6 = tpu.matmul %4, %5, %cst {dimension_numbers = #tpu.dot_dimension_numbers<[1], [0], [0], [1], [0, 0, 1, 1], [], []>} : vector<16x3072xbf16>, vector<3072x128xbf16>, vector<16x128xf32> -> vector<16x128xf32>
    %7 = arith.addf %3, %6 : vector<16x128xf32>
    %c0_6 = arith.constant 0 : index
    %c0_7 = arith.constant 0 : index
    %8 = vector.load %arg8[%c0_6, %c0_7] : memref<16x128xf32, #tpu.memory_space<vmem>>, vector<16x128xf32>
    tpu.vector_store %arg8[%c0_6, %c0_7], %7 {strides = array<i32>} : memref<16x128xf32, #tpu.memory_space<vmem>>, vector<16x128xf32>,
    %c0_i32_8 = arith.constant 0 : i32
    %9 = arith.cmpi eq, %arg1, %c0_i32_8 : i32
    %10 = arith.extui %9 : i1 to i32
    %c0_i32_9 = arith.constant 0 : i32
    %11 = arith.cmpi ne, %10, %c0_i32_9 : i32
    scf.if %11 {
      %c0_10 = arith.constant 0 : index
      %c0_11 = arith.constant 0 : index
      %12 = vector.load %arg8[%c0_10, %c0_11] : memref<16x128xf32, #tpu.memory_space<vmem>>, vector<16x128xf32>
      %c0_12 = arith.constant 0 : index
      %c0_13 = arith.constant 0 : index
      %13 = vector.load %arg4[%c0_12, %c0_13] : memref<1x128xf32, #tpu.memory_space<vmem>>, vector<1x128xf32>
      %14 = vector.broadcast %13 : vector<1x128xf32> to vector<16x128xf32>
      %15 = arith.addf %12, %14 : vector<16x128xf32>
      %cst_14 = arith.constant 0.000000e+00 : f32
      %16 = vector.broadcast %cst_14 : f32 to vector<16x128xf32>
      %17 = arith.maximumf %15, %16 : vector<16x128xf32>
      %18 = arith.truncf %17 : vector<16x128xf32> to vector<16x128xbf16>
      %c0_15 = arith.constant 0 : index
      %c0_16 = arith.constant 0 : index
      %19 = vector.load %arg5[%c0_15, %c0_16] : memref<128x128xbf16, #tpu.memory_space<vmem>>, vector<128x128xbf16>
      %cst_17 = arith.constant dense<0.000000e+00> : vector<16x128xf32>
      %20 = tpu.matmul %18, %19, %cst_17 {dimension_numbers = #tpu.dot_dimension_numbers<[1], [0], [0], [1], [0, 0, 1, 1], [], []>} : vector<16x128xbf16>, vector<128x128xbf16>, vector<16x128xf32> -> vector<16x128xf32>
      %c0_18 = arith.constant 0 : index
      %c0_19 = arith.constant 0 : index
      %21 = vector.load %arg6[%c0_18, %c0_19] : memref<1x128xf32, #tpu.memory_space<vmem>>, vector<1x128xf32>
      %22 = vector.broadcast %21 : vector<1x128xf32> to vector<16x128xf32>
      %23 = arith.addf %20, %22 : vector<16x128xf32>
      %24 = vector.extract_strided_slice %23 {offsets = [0, 0], sizes = [16, 1], strides = [1, 1]} : vector<16x128xf32> to vector<16x1xf32>
      %25 = vector.extract_strided_slice %23 {offsets = [0, 1], sizes = [16, 1], strides = [1, 1]} : vector<16x128xf32> to vector<16x1xf32>
      %26 = arith.cmpf ogt, %25, %24 : vector<16x1xf32>
      %27 = arith.extui %26 : vector<16x1xi1> to vector<16x1xi32>
      %28 = vector.extract_strided_slice %23 {offsets = [0, 2], sizes = [16, 1], strides = [1, 1]} : vector<16x128xf32> to vector<16x1xf32>
      %cst_20 = arith.constant 1.000000e+02 : f32
      %29 = vector.broadcast %cst_20 : f32 to vector<16x1xf32>
      %30 = arith.mulf %28, %29 : vector<16x1xf32>
      %31 = math.roundeven %30 : vector<16x1xf32>
      %32 = arith.fptosi %31 : vector<16x1xf32> to vector<16x1xi32>
      %33 = tpu.iota {dimensions = array<i32: 1>} : vector<16x128xi32>
      %c0_i32_21 = arith.constant 0 : i32
      %34 = vector.broadcast %c0_i32_21 : i32 to vector<16x128xi32>
      %35 = arith.cmpi eq, %33, %34 : vector<16x128xi32>
      %c1_i32 = arith.constant 1 : i32
      %36 = vector.broadcast %c1_i32 : i32 to vector<16x128xi32>
      %37 = arith.cmpi eq, %33, %36 : vector<16x128xi32>
      %c0_i32_22 = arith.constant 0 : i32
      %38 = vector.shape_cast %32 : vector<16x1xi32> to vector<16x1xi32>
      %39 = vector.broadcast %38 : vector<16x1xi32> to vector<16x128xi32>
      %40 = vector.broadcast %c0_i32_22 : i32 to vector<16x128xi32>
      %41 = arith.select %37, %39, %40 : vector<16x128xi1>, vector<16x128xi32>
      %42 = vector.shape_cast %27 : vector<16x1xi32> to vector<16x1xi32>
      %43 = vector.broadcast %42 : vector<16x1xi32> to vector<16x128xi32>
      %44 = arith.select %35, %43, %41 : vector<16x128xi1>, vector<16x128xi32>
      %c0_23 = arith.constant 0 : index
      %c0_24 = arith.constant 0 : index
      %45 = vector.load %arg7[%c0_23, %c0_24] : memref<16x128xi32, #tpu.memory_space<vmem>>, vector<16x128xi32>
      tpu.vector_store %arg7[%c0_23, %c0_24], %44 {strides = array<i32>} : memref<16x128xi32, #tpu.memory_space<vmem>>, vector<16x128xi32>,
    } else {
    }
    return
  }
  func.func @transform_0(%arg0: i32, %arg1: i32) -> (i32, i32) {
    %c0_i32 = arith.constant 0 : i32
    return %arg0, %arg1 : i32, i32
  }
  func.func @transform_1(%arg0: i32, %arg1: i32) -> (i32, i32) {
    %c0_i32 = arith.constant 0 : i32
    %c0_i32_0 = arith.constant 0 : i32
    return %arg1, %c0_i32 : i32, i32
  }
  func.func @transform_2(%arg0: i32, %arg1: i32) -> (i32, i32) {
    %c0_i32 = arith.constant 0 : i32
    %c0_i32_0 = arith.constant 0 : i32
    %c0_i32_1 = arith.constant 0 : i32
    return %c0_i32, %c0_i32_0 : i32, i32
  }
  func.func @transform_3(%arg0: i32, %arg1: i32) -> (i32, i32) {
    %c0_i32 = arith.constant 0 : i32
    %c0_i32_0 = arith.constant 0 : i32
    %c0_i32_1 = arith.constant 0 : i32
    return %c0_i32, %c0_i32_0 : i32, i32
  }
  func.func @transform_4(%arg0: i32, %arg1: i32) -> (i32, i32) {
    %c0_i32 = arith.constant 0 : i32
    %c0_i32_0 = arith.constant 0 : i32
    %c0_i32_1 = arith.constant 0 : i32
    return %c0_i32, %c0_i32_0 : i32, i32
  }
  func.func @transform_5(%arg0: i32, %arg1: i32) -> (i32, i32) {
    %c0_i32 = arith.constant 0 : i32
    %c0_i32_0 = arith.constant 0 : i32
    return %arg0, %c0_i32 : i32, i32
  }
}

</mosaic_0001>

<llo_original>
// kernel: tpu_custom_call.1
$region0: #{tpu_custom_call.1}
  #allocation0 [shape = 'u32[]', space=smem, size = 0x4, offset = 0x4, fixed_abs, tag = 'smem constant byte address 0x4 - core index']
  #allocation1 [shape = 'u32[144,128]{1,0:T(1,128)}', space=vmem, size = 0x12000, scoped, tag = 'internal scratch']
  #allocation2 [shape = 'f32[16,128]{1,0:T(8,128)}', space=vmem, size = 0x2000, scoped, tag = 'scratch operand']
  %s0 = inlined_call_operand.hbm [shape: bf16[16,3072], index: 0, kind: input, shape index: {}]
  %s1 = inlined_call_operand.hbm [shape: bf16[3072,128], index: 1, kind: input, shape index: {}]
  %s2 = inlined_call_operand.vmem [shape: f32[1,128], index: 2, kind: input, shape index: {}]
  %s3 = inlined_call_operand.hbm [shape: bf16[128,128], index: 3, kind: input, shape index: {}]
  %s4 = inlined_call_operand.vmem [shape: f32[1,128], index: 4, kind: input, shape index: {}]
  %s5 = inlined_call_operand.hbm [shape: s32[16,128], index: 5, kind: output, shape index: {}]
  %s6 = sld [smem:[#allocation0]]
  $region50: #{tpu_custom_call.1} parent=0
    _
  %s8 = ssub.s32 1, %s6
  %s9 = scalar_select 0, %s8, %s6
  $region1: #{tpu_custom_call.1} parent=0
    #allocation3 [shape = 'u8[98304]{0}', space=vmem, size = 0x18000, scoped, tag = 'input window, operand 0, single buffered']
    #allocation4 [shape = 's32[1]{0}', space=sflag, size = 0x4, scoped, tag = 'scoped memory for tpu_custom_call.1']
    #allocation5 [shape = 's32[1]{0}', space=sflag, size = 0x4, scoped, tag = 'scoped memory for tpu_custom_call.1']
    #allocation6 [shape = 'u8[786432]{0}', space=vmem, size = 0xc0000, scoped, tag = 'input window, operand 1, single buffered']
    #allocation7 [shape = 's32[1]{0}', space=sflag, size = 0x4, scoped, tag = 'scoped memory for tpu_custom_call.1']
    #allocation8 [shape = 'u8[32768]{0}', space=vmem, size = 0x8000, scoped, tag = 'input window, operand 3, single buffered']
    #allocation9 [shape = 'u8[8192]{0}', space=vmem, size = 0x2000, scoped, tag = 'output window, operand 0, single buffered']
    %10 = vsyncpa [#allocation4], 0
    %11 = vsyncpa [#allocation7], 0
    %12 = vsyncpa [#allocation5], 0
    // Predicated region
    $region2: #{tpu_custom_call.1} parent=1 // pred_check
      _
    $region3: #{tpu_custom_call.1} parent=1 // pred_check_branch
      %14 = sbr.rel (0) target = $region5
    $region4: #{tpu_custom_call.1} parent=1 // pred_region
      %s16 = ssub.s32 3072, 3072
      %17 = vsyncadd [#allocation4], %s16
      %s18 = sshll.u32 [#allocation3], 4
      %s19 = int_to_ptr.vmem [resolvable:$true] %s18
      %24 = dma.hbm_to_vmem [thread:$0]  %s0, 3072, %s19, [#allocation4], 1536, 1536, 96
    $region5: #{tpu_custom_call.1} parent=1 // pred_fallthru
      _
    // Predicated region
    $region6: #{tpu_custom_call.1} parent=1 // pred_check
      _
    $region7: #{tpu_custom_call.1} parent=1 // pred_check_branch
      %26 = sbr.rel (0) target = $region9
    $region8: #{tpu_custom_call.1} parent=1 // pred_region
      %s28 = ssub.s32 24576, 24576
      %29 = vsyncadd [#allocation7], %s28
      %s30 = sshll.u32 [#allocation6], 4
      %s31 = int_to_ptr.vmem [resolvable:$true] %s30
      %36 = dma.hbm_to_vmem [thread:$0]  %s1, 24576, %s31, [#allocation7], 64, 64, 4
    $region9: #{tpu_custom_call.1} parent=1 // pred_fallthru
      _
    // Predicated region
    $region10: #{tpu_custom_call.1} parent=1 // pred_check
      _
    $region11: #{tpu_custom_call.1} parent=1 // pred_check_branch
      %38 = sbr.rel (0) target = $region13
    $region12: #{tpu_custom_call.1} parent=1 // pred_region
      _
    $region13: #{tpu_custom_call.1} parent=1 // pred_fallthru
      _
    // Predicated region
    $region14: #{tpu_custom_call.1} parent=1 // pred_check
      _
    $region15: #{tpu_custom_call.1} parent=1 // pred_check_branch
      %40 = sbr.rel (0) target = $region17
    $region16: #{tpu_custom_call.1} parent=1 // pred_region
      %s42 = ssub.s32 1024, 1024
      %43 = vsyncadd [#allocation7], %s42
      %s44 = sshll.u32 [#allocation8], 4
      %s45 = int_to_ptr.vmem [resolvable:$true] %s44
      %50 = dma.hbm_to_vmem [thread:$0]  %s3, 1024, %s45, [#allocation7], 64, 64, 4
    $region17: #{tpu_custom_call.1} parent=1 // pred_fallthru
      _
    // Predicated region
    $region18: #{tpu_custom_call.1} parent=1 // pred_check
      _
    $region19: #{tpu_custom_call.1} parent=1 // pred_check_branch
      %52 = sbr.rel (0) target = $region21
    $region20: #{tpu_custom_call.1} parent=1 // pred_region
      _
    $region21: #{tpu_custom_call.1} parent=1 // pred_fallthru
      _
    // Predicated region
    $region22: #{tpu_custom_call.1} parent=1 // pred_check
      _
    $region23: #{tpu_custom_call.1} parent=1 // pred_check_branch
      %54 = sbr.rel (0) target = $region25
    $region24: #{tpu_custom_call.1} parent=1 // pred_region
      %55 = dma.done [#allocation4], 3072
    $region25: #{tpu_custom_call.1} parent=1 // pred_fallthru
      _
    // Predicated region
    $region26: #{tpu_custom_call.1} parent=1 // pred_check
      _
    $region27: #{tpu_custom_call.1} parent=1 // pred_check_branch
      %57 = sbr.rel (0) target = $region29
    $region28: #{tpu_custom_call.1} parent=1 // pred_region
      %58 = dma.done [#allocation7], 24576
    $region29: #{tpu_custom_call.1} parent=1 // pred_fallthru
      _
    // Predicated region
    $region30: #{tpu_custom_call.1} parent=1 // pred_check
      _
    $region31: #{tpu_custom_call.1} parent=1 // pred_check_branch
      %60 = sbr.rel (0) target = $region33
    $region32: #{tpu_custom_call.1} parent=1 // pred_region
      %61 = dma.done [#allocation7], 1024
    $region33: #{tpu_custom_call.1} parent=1 // pred_fallthru
      _
    %p63 = scmp.eq.s32.totalorder 0, 0
    // Predicated region
    $region34: #{tpu_custom_call.1} parent=1 // pred_check
      %p64 = pneg %p63
    $region35: #{tpu_custom_call.1} parent=1 // pred_check_branch
      %66 = sbr.rel (%p64) target = $region37
    $region36: #{tpu_custom_call.1} parent=1 // pred_region
      %67 = vst [vmem:[#allocation2] sm:$0xff] 0.0
      %68 = vst [vmem:[#allocation2 + $0x8] sm:$0xff] 0.0
    $region37: #{tpu_custom_call.1} parent=1 // pred_fallthru
      _
    %v69 = vld [vmem:[#allocation2] sm:$0xff]
    %v70 = vld [vmem:[#allocation2 + $0x8] sm:$0xff]
    %v71 = vld [vmem:[#allocation3] sm:$0xff]
    %v72 = vld [vmem:[#allocation3 + $0x8] sm:$0xff]
    %v73 = vld [vmem:[#allocation3 + $0x10] sm:$0xff]
    %v74 = vld [vmem:[#allocation3 + $0x18] sm:$0xff]
    %v75 = vld [vmem:[#allocation3 + $0x20] sm:$0xff]
    %v76 = vld [vmem:[#allocation3 + $0x28] sm:$0xff]
    %v77 = vld [vmem:[#allocation3 + $0x30] sm:$0xff]
    %v78 = vld [vmem:[#allocation3 + $0x38] sm:$0xff]
    %v79 = vld [vmem:[#allocation3 + $0x40] sm:$0xff]
    %v80 = vld [vmem:[#allocation3 + $0x48] sm:$0xff]
    %v81 = vld [vmem:[#allocation3 + $0x50] sm:$0xff]
    %v82 = vld [vmem:[#allocation3 + $0x58] sm:$0xff]
    %v83 = vld [vmem:[#allocation3 + $0x60] sm:$0xff]
    %v84 = vld [vmem:[#allocation3 + $0x68] sm:$0xff]
    %v85 = vld [vmem:[#allocation3 + $0x70] sm:$0xff]
    %v86 = vld [vmem:[#allocation3 + $0x78] sm:$0xff]
    %v87 = vld [vmem:[#allocation3 + $0x80] sm:$0xff]
    %v88 = vld [vmem:[#allocation3 + $0x88] sm:$0xff]
    %v89 = vld [vmem:[#allocation3 + $0x90] sm:$0xff]
    %v90 = vld [vmem:[#allocation3 + $0x98] sm:$0xff]
    %v91 = vld [vmem:[#allocation3 + $0xa0] sm:$0xff]
    %v92 = vld [vmem:[#allocation3 + $0xa8] sm:$0xff]
    %v93 = vld [vmem:[#allocation3 + $0xb0] sm:$0xff]
    %v94 = vld [vmem:[#allocation3 + $0xb8] sm:$0xff]
    %v95 = vld [vmem:[#allocation6] sm:$0xf]
    %v96 = vld [vmem:[#allocation6 + $0x4] sm:$0xf]
    %v97 = vld [vmem:[#allocation6 + $0x8] sm:$0xf]
    %v98 = vld [vmem:[#allocation6 + $0xc] sm:$0xf]
    %v99 = vld [vmem:[#allocation6 + $0x10] sm:$0xf]
    %v100 = vld [vmem:[#allocation6 + $0x14] sm:$0xf]
    %v101 = vld [vmem:[#allocation6 + $0x18] sm:$0xf]
    %v102 = vld [vmem:[#allocation6 + $0x1c] sm:$0xf]
    %v103 = vld [vmem:[#allocation6 + $0x20] sm:$0xf]
    %v104 = vld [vmem:[#allocation6 + $0x24] sm:$0xf]
    %v105 = vld [vmem:[#allocation6 + $0x28] sm:$0xf]
    %v106 = vld [vmem:[#allocation6 + $0x2c] sm:$0xf]
    %v107 = vld [vmem:[#allocation6 + $0x30] sm:$0xf]
    %v108 = vld [vmem:[#allocation6 + $0x34] sm:$0xf]
    %v109 = vld [vmem:[#allocation6 + $0x38] sm:$0xf]
    %v110 = vld [vmem:[#allocation6 + $0x3c] sm:$0xf]
    %v111 = vld [vmem:[#allocation6 + $0x40] sm:$0xf]
    %v112 = vld [vmem:[#allocation6 + $0x44] sm:$0xf]
    %v113 = vld [vmem:[#allocation6 + $0x48] sm:$0xf]
    %v114 = vld [vmem:[#allocation6 + $0x4c] sm:$0xf]
    %v115 = vld [vmem:[#allocation6 + $0x50] sm:$0xf]
    %v116 = vld [vmem:[#allocation6 + $0x54] sm:$0xf]
    %v117 = vld [vmem:[#allocation6 + $0x58] sm:$0xf]
    %v118 = vld [vmem:[#allocation6 + $0x5c] sm:$0xf]
    %v119 = vld [vmem:[#allocation6 + $0x60] sm:$0xf]
    %v120 = vld [vmem:[#allocation6 + $0x64] sm:$0xf]
    %v121 = vld [vmem:[#allocation6 + $0x68] sm:$0xf]
    %v122 = vld [vmem:[#allocation6 + $0x6c] sm:$0xf]
    %v123 = vld [vmem:[#allocation6 + $0x70] sm:$0xf]
    %v124 = vld [vmem:[#allocation6 + $0x74] sm:$0xf]
    %v125 = vld [vmem:[#allocation6 + $0x78] sm:$0xf]
    %v126 = vld [vmem:[#allocation6 + $0x7c] sm:$0xf]
    %v127 = vld [vmem:[#allocation6 + $0x80] sm:$0xf]
    %v128 = vld [vmem:[#allocation6 + $0x84] sm:$0xf]
    %v129 = vld [vmem:[#allocation6 + $0x88] sm:$0xf]
    %v130 = vld [vmem:[#allocation6 + $0x8c] sm:$0xf]
    %v131 = vld [vmem:[#allocation6 + $0x90] sm:$0xf]
    %v132 = vld [vmem:[#allocation6 + $0x94] sm:$0xf]
    %v133 = vld [vmem:[#allocation6 + $0x98] sm:$0xf]
    %v134 = vld [vmem:[#allocation6 + $0x9c] sm:$0xf]
    %v135 = vld [vmem:[#allocation6 + $0xa0] sm:$0xf]
    %v136 = vld [vmem:[#allocation6 + $0xa4] sm:$0xf]
    %v137 = vld [vmem:[#allocation6 + $0xa8] sm:$0xf]
    %v138 = vld [vmem:[#allocation6 + $0xac] sm:$0xf]
    %v139 = vld [vmem:[#allocation6 + $0xb0] sm:$0xf]
    %v140 = vld [vmem:[#allocation6 + $0xb4] sm:$0xf]
    %v141 = vld [vmem:[#allocation6 + $0xb8] sm:$0xf]
    %v142 = vld [vmem:[#allocation6 + $0xbc] sm:$0xf]
    %v143 = vld [vmem:[#allocation6 + $0xc0] sm:$0xf]
    %v144 = vld [vmem:[#allocation6 + $0xc4] sm:$0xf]
    %v145 = vld [vmem:[#allocation6 + $0xc8] sm:$0xf]
    %v146 = vld [vmem:[#allocation6 + $0xcc] sm:$0xf]
    %v147 = vld [vmem:[#allocation6 + $0xd0] sm:$0xf]
    %v148 = vld [vmem:[#allocation6 + $0xd4] sm:$0xf]
    %v149 = vld [vmem:[#allocation6 + $0xd8] sm:$0xf]
    %v150 = vld [vmem:[#allocation6 + $0xdc] sm:$0xf]
    %v151 = vld [vmem:[#allocation6 + $0xe0] sm:$0xf]
    %v152 = vld [vmem:[#allocation6 + $0xe4] sm:$0xf]
    %v153 = vld [vmem:[#allocation6 + $0xe8] sm:$0xf]
    %v154 = vld [vmem:[#allocation6 + $0xec] sm:$0xf]
    %v155 = vld [vmem:[#allocation6 + $0xf0] sm:$0xf]
    %v156 = vld [vmem:[#allocation6 + $0xf4] sm:$0xf]
    %v157 = vld [vmem:[#allocation6 + $0xf8] sm:$0xf]
    %v158 = vld [vmem:[#allocation6 + $0xfc] sm:$0xf]
    %v159 = vld [vmem:[#allocation6 + $0x100] sm:$0xf]
    %v160 = vld [vmem:[#allocation6 + $0x104] sm:$0xf]
    %v161 = vld [vmem:[#allocation6 + $0x108] sm:$0xf]
    %v162 = vld [vmem:[#allocation6 + $0x10c] sm:$0xf]
    %v163 = vld [vmem:[#allocation6 + $0x110] sm:$0xf]
    %v164 = vld [vmem:[#allocation6 + $0x114] sm:$0xf]
    %v165 = vld [vmem:[#allocation6 + $0x118] sm:$0xf]
    %v166 = vld [vmem:[#allocation6 + $0x11c] sm:$0xf]
    %v167 = vld [vmem:[#allocation6 + $0x120] sm:$0xf]
    %v168 = vld [vmem:[#allocation6 + $0x124] sm:$0xf]
    %v169 = vld [vmem:[#allocation6 + $0x128] sm:$0xf]
    %v170 = vld [vmem:[#allocation6 + $0x12c] sm:$0xf]
    %v171 = vld [vmem:[#allocation6 + $0x130] sm:$0xf]
    %v172 = vld [vmem:[#allocation6 + $0x134] sm:$0xf]
    %v173 = vld [vmem:[#allocation6 + $0x138] sm:$0xf]
    %v174 = vld [vmem:[#allocation6 + $0x13c] sm:$0xf]
    %v175 = vld [vmem:[#allocation6 + $0x140] sm:$0xf]
    %v176 = vld [vmem:[#allocation6 + $0x144] sm:$0xf]
    %v177 = vld [vmem:[#allocation6 + $0x148] sm:$0xf]
    %v178 = vld [vmem:[#allocation6 + $0x14c] sm:$0xf]
    %v179 = vld [vmem:[#allocation6 + $0x150] sm:$0xf]
    %v180 = vld [vmem:[#allocation6 + $0x154] sm:$0xf]
    %v181 = vld [vmem:[#allocation6 + $0x158] sm:$0xf]
    %v182 = vld [vmem:[#allocation6 + $0x15c] sm:$0xf]
    %v183 = vld [vmem:[#allocation6 + $0x160] sm:$0xf]
    %v184 = vld [vmem:[#allocation6 + $0x164] sm:$0xf]
    %v185 = vld [vmem:[#allocation6 + $0x168] sm:$0xf]
    %v186 = vld [vmem:[#allocation6 + $0x16c] sm:$0xf]
    %v187 = vld [vmem:[#allocation6 + $0x170] sm:$0xf]
    %v188 = vld [vmem:[#allocation6 + $0x174] sm:$0xf]
    %v189 = vld [vmem:[#allocation6 + $0x178] sm:$0xf]
    %v190 = vld [vmem:[#allocation6 + $0x17c] sm:$0xf]
    %v191 = vld [vmem:[#allocation6 + $0x180] sm:$0xf]
    %v192 = vld [vmem:[#allocation6 + $0x184] sm:$0xf]
    %v193 = vld [vmem:[#allocation6 + $0x188] sm:$0xf]
    %v194 = vld [vmem:[#allocation6 + $0x18c] sm:$0xf]
    %v195 = vld [vmem:[#allocation6 + $0x190] sm:$0xf]
    %v196 = vld [vmem:[#allocation6 + $0x194] sm:$0xf]
    %v197 = vld [vmem:[#allocation6 + $0x198] sm:$0xf]
    %v198 = vld [vmem:[#allocation6 + $0x19c] sm:$0xf]
    %v199 = vld [vmem:[#allocation6 + $0x1a0] sm:$0xf]
    %v200 = vld [vmem:[#allocation6 + $0x1a4] sm:$0xf]
    %v201 = vld [vmem:[#allocation6 + $0x1a8] sm:$0xf]
    %v202 = vld [vmem:[#allocation6 + $0x1ac] sm:$0xf]
    %v203 = vld [vmem:[#allocation6 + $0x1b0] sm:$0xf]
    %v204 = vld [vmem:[#allocation6 + $0x1b4] sm:$0xf]
    %v205 = vld [vmem:[#allocation6 + $0x1b8] sm:$0xf]
    %v206 = vld [vmem:[#allocation6 + $0x1bc] sm:$0xf]
    %v207 = vld [vmem:[#allocation6 + $0x1c0] sm:$0xf]
    %v208 = vld [vmem:[#allocation6 + $0x1c4] sm:$0xf]
    %v209 = vld [vmem:[#allocation6 + $0x1c8] sm:$0xf]
    %v210 = vld [vmem:[#allocation6 + $0x1cc] sm:$0xf]
    %v211 = vld [vmem:[#allocation6 + $0x1d0] sm:$0xf]
    %v212 = vld [vmem:[#allocation6 + $0x1d4] sm:$0xf]
    %v213 = vld [vmem:[#allocation6 + $0x1d8] sm:$0xf]
    %v214 = vld [vmem:[#allocation6 + $0x1dc] sm:$0xf]
    %v215 = vld [vmem:[#allocation6 + $0x1e0] sm:$0xf]
    %v216 = vld [vmem:[#allocation6 + $0x1e4] sm:$0xf]
    %v217 = vld [vmem:[#allocation6 + $0x1e8] sm:$0xf]
    %v218 = vld [vmem:[#allocation6 + $0x1ec] sm:$0xf]
    %v219 = vld [vmem:[#allocation6 + $0x1f0] sm:$0xf]
    %v220 = vld [vmem:[#allocation6 + $0x1f4] sm:$0xf]
    %v221 = vld [vmem:[#allocation6 + $0x1f8] sm:$0xf]
    %v222 = vld [vmem:[#allocation6 + $0x1fc] sm:$0xf]
    %v223 = vld [vmem:[#allocation6 + $0x200] sm:$0xf]
    %v224 = vld [vmem:[#allocation6 + $0x204] sm:$0xf]
    %v225 = vld [vmem:[#allocation6 + $0x208] sm:$0xf]
    %v226 = vld [vmem:[#allocation6 + $0x20c] sm:$0xf]
    %v227 = vld [vmem:[#allocation6 + $0x210] sm:$0xf]
    %v228 = vld [vmem:[#allocation6 + $0x214] sm:$0xf]
    %v229 = vld [vmem:[#allocation6 + $0x218] sm:$0xf]
    %v230 = vld [vmem:[#allocation6 + $0x21c] sm:$0xf]
    %v231 = vld [vmem:[#allocation6 + $0x220] sm:$0xf]
    %v232 = vld [vmem:[#allocation6 + $0x224] sm:$0xf]
    %v233 = vld [vmem:[#allocation6 + $0x228] sm:$0xf]
    %v234 = vld [vmem:[#allocation6 + $0x22c] sm:$0xf]
    %v235 = vld [vmem:[#allocation6 + $0x230] sm:$0xf]
    %v236 = vld [vmem:[#allocation6 + $0x234] sm:$0xf]
    %v237 = vld [vmem:[#allocation6 + $0x238] sm:$0xf]
    %v238 = vld [vmem:[#allocation6 + $0x23c] sm:$0xf]
    %v239 = vld [vmem:[#allocation6 + $0x240] sm:$0xf]
    %v240 = vld [vmem:[#allocation6 + $0x244] sm:$0xf]
    %v241 = vld [vmem:[#allocation6 + $0x248] sm:$0xf]
    %v242 = vld [vmem:[#allocation6 + $0x24c] sm:$0xf]
    %v243 = vld [vmem:[#allocation6 + $0x250] sm:$0xf]
    %v244 = vld [vmem:[#allocation6 + $0x254] sm:$0xf]
    %v245 = vld [vmem:[#allocation6 + $0x258] sm:$0xf]
    %v246 = vld [vmem:[#allocation6 + $0x25c] sm:$0xf]
    %v247 = vld [vmem:[#allocation6 + $0x260] sm:$0xf]
    %v248 = vld [vmem:[#allocation6 + $0x264] sm:$0xf]
    %v249 = vld [vmem:[#allocation6 + $0x268] sm:$0xf]
    %v250 = vld [vmem:[#allocation6 + $0x26c] sm:$0xf]
    %v251 = vld [vmem:[#allocation6 + $0x270] sm:$0xf]
    %v252 = vld [vmem:[#allocation6 + $0x274] sm:$0xf]
    %v253 = vld [vmem:[#allocation6 + $0x278] sm:$0xf]
    %v254 = vld [vmem:[#allocation6 + $0x27c] sm:$0xf]
    %v255 = vld [vmem:[#allocation6 + $0x280] sm:$0xf]
    %v256 = vld [vmem:[#allocation6 + $0x284] sm:$0xf]
    %v257 = vld [vmem:[#allocation6 + $0x288] sm:$0xf]
    %v258 = vld [vmem:[#allocation6 + $0x28c] sm:$0xf]
    %v259 = vld [vmem:[#allocation6 + $0x290] sm:$0xf]
    %v260 = vld [vmem:[#allocation6 + $0x294] sm:$0xf]
    %v261 = vld [vmem:[#allocation6 + $0x298] sm:$0xf]
    %v262 = vld [vmem:[#allocation6 + $0x29c] sm:$0xf]
    %v263 = vld [vmem:[#allocation6 + $0x2a0] sm:$0xf]
    %v264 = vld [vmem:[#allocation6 + $0x2a4] sm:$0xf]
    %v265 = vld [vmem:[#allocation6 + $0x2a8] sm:$0xf]
    %v266 = vld [vmem:[#allocation6 + $0x2ac] sm:$0xf]
    %v267 = vld [vmem:[#allocation6 + $0x2b0] sm:$0xf]
    %v268 = vld [vmem:[#allocation6 + $0x2b4] sm:$0xf]
    %v269 = vld [vmem:[#allocation6 + $0x2b8] sm:$0xf]
    %v270 = vld [vmem:[#allocation6 + $0x2bc] sm:$0xf]
    %v271 = vld [vmem:[#allocation6 + $0x2c0] sm:$0xf]
    %v272 = vld [vmem:[#allocation6 + $0x2c4] sm:$0xf]
    %v273 = vld [vmem:[#allocation6 + $0x2c8] sm:$0xf]
    %v274 = vld [vmem:[#allocation6 + $0x2cc] sm:$0xf]
    %v275 = vld [vmem:[#allocation6 + $0x2d0] sm:$0xf]
    %v276 = vld [vmem:[#allocation6 + $0x2d4] sm:$0xf]
    %v277 = vld [vmem:[#allocation6 + $0x2d8] sm:$0xf]
    %v278 = vld [vmem:[#allocation6 + $0x2dc] sm:$0xf]
    %v279 = vld [vmem:[#allocation6 + $0x2e0] sm:$0xf]
    %v280 = vld [vmem:[#allocation6 + $0x2e4] sm:$0xf]
    %v281 = vld [vmem:[#allocation6 + $0x2e8] sm:$0xf]
    %v282 = vld [vmem:[#allocation6 + $0x2ec] sm:$0xf]
    %v283 = vld [vmem:[#allocation6 + $0x2f0] sm:$0xf]
    %v284 = vld [vmem:[#allocation6 + $0x2f4] sm:$0xf]
    %v285 = vld [vmem:[#allocation6 + $0x2f8] sm:$0xf]
    %v286 = vld [vmem:[#allocation6 + $0x2fc] sm:$0xf]
    %v287 = vld [vmem:[#allocation6 + $0x300] sm:$0xf]
    %v288 = vld [vmem:[#allocation6 + $0x304] sm:$0xf]
    %v289 = vld [vmem:[#allocation6 + $0x308] sm:$0xf]
    %v290 = vld [vmem:[#allocation6 + $0x30c] sm:$0xf]
    %v291 = vld [vmem:[#allocation6 + $0x310] sm:$0xf]
    %v292 = vld [vmem:[#allocation6 + $0x314] sm:$0xf]
    %v293 = vld [vmem:[#allocation6 + $0x318] sm:$0xf]
    %v294 = vld [vmem:[#allocation6 + $0x31c] sm:$0xf]
    %v295 = vld [vmem:[#allocation6 + $0x320] sm:$0xf]
    %v296 = vld [vmem:[#allocation6 + $0x324] sm:$0xf]
    %v297 = vld [vmem:[#allocation6 + $0x328] sm:$0xf]
    %v298 = vld [vmem:[#allocation6 + $0x32c] sm:$0xf]
    %v299 = vld [vmem:[#allocation6 + $0x330] sm:$0xf]
    %v300 = vld [vmem:[#allocation6 + $0x334] sm:$0xf]
    %v301 = vld [vmem:[#allocation6 + $0x338] sm:$0xf]
    %v302 = vld [vmem:[#allocation6 + $0x33c] sm:$0xf]
    %v303 = vld [vmem:[#allocation6 + $0x340] sm:$0xf]
    %v304 = vld [vmem:[#allocation6 + $0x344] sm:$0xf]
    %v305 = vld [vmem:[#allocation6 + $0x348] sm:$0xf]
    %v306 = vld [vmem:[#allocation6 + $0x34c] sm:$0xf]
    %v307 = vld [vmem:[#allocation6 + $0x350] sm:$0xf]
    %v308 = vld [vmem:[#allocation6 + $0x354] sm:$0xf]
    %v309 = vld [vmem:[#allocation6 + $0x358] sm:$0xf]
    %v310 = vld [vmem:[#allocation6 + $0x35c] sm:$0xf]
    %v311 = vld [vmem:[#allocation6 + $0x360] sm:$0xf]
    %v312 = vld [vmem:[#allocation6 + $0x364] sm:$0xf]
    %v313 = vld [vmem:[#allocation6 + $0x368] sm:$0xf]
    %v314 = vld [vmem:[#allocation6 + $0x36c] sm:$0xf]
    %v315 = vld [vmem:[#allocation6 + $0x370] sm:$0xf]
    %v316 = vld [vmem:[#allocation6 + $0x374] sm:$0xf]
    %v317 = vld [vmem:[#allocation6 + $0x378] sm:$0xf]
    %v318 = vld [vmem:[#allocation6 + $0x37c] sm:$0xf]
    %v319 = vld [vmem:[#allocation6 + $0x380] sm:$0xf]
    %v320 = vld [vmem:[#allocation6 + $0x384] sm:$0xf]
    %v321 = vld [vmem:[#allocation6 + $0x388] sm:$0xf]
    %v322 = vld [vmem:[#allocation6 + $0x38c] sm:$0xf]
    %v323 = vld [vmem:[#allocation6 + $0x390] sm:$0xf]
    %v324 = vld [vmem:[#allocation6 + $0x394] sm:$0xf]
    %v325 = vld [vmem:[#allocation6 + $0x398] sm:$0xf]
    %v326 = vld [vmem:[#allocation6 + $0x39c] sm:$0xf]
    %v327 = vld [vmem:[#allocation6 + $0x3a0] sm:$0xf]
    %v328 = vld [vmem:[#allocation6 + $0x3a4] sm:$0xf]
    %v329 = vld [vmem:[#allocation6 + $0x3a8] sm:$0xf]
    %v330 = vld [vmem:[#allocation6 + $0x3ac] sm:$0xf]
    %v331 = vld [vmem:[#allocation6 + $0x3b0] sm:$0xf]
    %v332 = vld [vmem:[#allocation6 + $0x3b4] sm:$0xf]
    %v333 = vld [vmem:[#allocation6 + $0x3b8] sm:$0xf]
    %v334 = vld [vmem:[#allocation6 + $0x3bc] sm:$0xf]
    %v335 = vld [vmem:[#allocation6 + $0x3c0] sm:$0xf]
    %v336 = vld [vmem:[#allocation6 + $0x3c4] sm:$0xf]
    %v337 = vld [vmem:[#allocation6 + $0x3c8] sm:$0xf]
    %v338 = vld [vmem:[#allocation6 + $0x3cc] sm:$0xf]
    %v339 = vld [vmem:[#allocation6 + $0x3d0] sm:$0xf]
    %v340 = vld [vmem:[#allocation6 + $0x3d4] sm:$0xf]
    %v341 = vld [vmem:[#allocation6 + $0x3d8] sm:$0xf]
    %v342 = vld [vmem:[#allocation6 + $0x3dc] sm:$0xf]
    %v343 = vld [vmem:[#allocation6 + $0x3e0] sm:$0xf]
    %v344 = vld [vmem:[#allocation6 + $0x3e4] sm:$0xf]
    %v345 = vld [vmem:[#allocation6 + $0x3e8] sm:$0xf]
    %v346 = vld [vmem:[#allocation6 + $0x3ec] sm:$0xf]
    %v347 = vld [vmem:[#allocation6 + $0x3f0] sm:$0xf]
    %v348 = vld [vmem:[#allocation6 + $0x3f4] sm:$0xf]
    %v349 = vld [vmem:[#allocation6 + $0x3f8] sm:$0xf]
    %v350 = vld [vmem:[#allocation6 + $0x3fc] sm:$0xf]
    %v351 = vld [vmem:[#allocation6 + $0x400] sm:$0xf]
    %v352 = vld [vmem:[#allocation6 + $0x404] sm:$0xf]
    %v353 = vld [vmem:[#allocation6 + $0x408] sm:$0xf]
    %v354 = vld [vmem:[#allocation6 + $0x40c] sm:$0xf]
    %v355 = vld [vmem:[#allocation6 + $0x410] sm:$0xf]
    %v356 = vld [vmem:[#allocation6 + $0x414] sm:$0xf]
    %v357 = vld [vmem:[#allocation6 + $0x418] sm:$0xf]
    %v358 = vld [vmem:[#allocation6 + $0x41c] sm:$0xf]
    %v359 = vld [vmem:[#allocation6 + $0x420] sm:$0xf]
    %v360 = vld [vmem:[#allocation6 + $0x424] sm:$0xf]
    %v361 = vld [vmem:[#allocation6 + $0x428] sm:$0xf]
    %v362 = vld [vmem:[#allocation6 + $0x42c] sm:$0xf]
    %v363 = vld [vmem:[#allocation6 + $0x430] sm:$0xf]
    %v364 = vld [vmem:[#allocation6 + $0x434] sm:$0xf]
    %v365 = vld [vmem:[#allocation6 + $0x438] sm:$0xf]
    %v366 = vld [vmem:[#allocation6 + $0x43c] sm:$0xf]
    %v367 = vld [vmem:[#allocation6 + $0x440] sm:$0xf]
    %v368 = vld [vmem:[#allocation6 + $0x444] sm:$0xf]
    %v369 = vld [vmem:[#allocation6 + $0x448] sm:$0xf]
    %v370 = vld [vmem:[#allocation6 + $0x44c] sm:$0xf]
    %v371 = vld [vmem:[#allocation6 + $0x450] sm:$0xf]
    %v372 = vld [vmem:[#allocation6 + $0x454] sm:$0xf]
    %v373 = vld [vmem:[#allocation6 + $0x458] sm:$0xf]
    %v374 = vld [vmem:[#allocation6 + $0x45c] sm:$0xf]
    %v375 = vld [vmem:[#allocation6 + $0x460] sm:$0xf]
    %v376 = vld [vmem:[#allocation6 + $0x464] sm:$0xf]
    %v377 = vld [vmem:[#allocation6 + $0x468] sm:$0xf]
    %v378 = vld [vmem:[#allocation6 + $0x46c] sm:$0xf]
    %v379 = vld [vmem:[#allocation6 + $0x470] sm:$0xf]
    %v380 = vld [vmem:[#allocation6 + $0x474] sm:$0xf]
    %v381 = vld [vmem:[#allocation6 + $0x478] sm:$0xf]
    %v382 = vld [vmem:[#allocation6 + $0x47c] sm:$0xf]
    %v383 = vld [vmem:[#allocation6 + $0x480] sm:$0xf]
    %v384 = vld [vmem:[#allocation6 + $0x484] sm:$0xf]
    %v385 = vld [vmem:[#allocation6 + $0x488] sm:$0xf]
    %v386 = vld [vmem:[#allocation6 + $0x48c] sm:$0xf]
    %v387 = vld [vmem:[#allocation6 + $0x490] sm:$0xf]
    %v388 = vld [vmem:[#allocation6 + $0x494] sm:$0xf]
    %v389 = vld [vmem:[#allocation6 + $0x498] sm:$0xf]
    %v390 = vld [vmem:[#allocation6 + $0x49c] sm:$0xf]
    %v391 = vld [vmem:[#allocation6 + $0x4a0] sm:$0xf]
    %v392 = vld [vmem:[#allocation6 + $0x4a4] sm:$0xf]
    %v393 = vld [vmem:[#allocation6 + $0x4a8] sm:$0xf]
    %v394 = vld [vmem:[#allocation6 + $0x4ac] sm:$0xf]
    %v395 = vld [vmem:[#allocation6 + $0x4b0] sm:$0xf]
    %v396 = vld [vmem:[#allocation6 + $0x4b4] sm:$0xf]
    %v397 = vld [vmem:[#allocation6 + $0x4b8] sm:$0xf]
    %v398 = vld [vmem:[#allocation6 + $0x4bc] sm:$0xf]
    %v399 = vld [vmem:[#allocation6 + $0x4c0] sm:$0xf]
    %v400 = vld [vmem:[#allocation6 + $0x4c4] sm:$0xf]
    %v401 = vld [vmem:[#allocation6 + $0x4c8] sm:$0xf]
    %v402 = vld [vmem:[#allocation6 + $0x4cc] sm:$0xf]
    %v403 = vld [vmem:[#allocation6 + $0x4d0] sm:$0xf]
    %v404 = vld [vmem:[#allocation6 + $0x4d4] sm:$0xf]
    %v405 = vld [vmem:[#allocation6 + $0x4d8] sm:$0xf]
    %v406 = vld [vmem:[#allocation6 + $0x4dc] sm:$0xf]
    %v407 = vld [vmem:[#allocation6 + $0x4e0] sm:$0xf]
    %v408 = vld [vmem:[#allocation6 + $0x4e4] sm:$0xf]
    %v409 = vld [vmem:[#allocation6 + $0x4e8] sm:$0xf]
    %v410 = vld [vmem:[#allocation6 + $0x4ec] sm:$0xf]
    %v411 = vld [vmem:[#allocation6 + $0x4f0] sm:$0xf]
    %v412 = vld [vmem:[#allocation6 + $0x4f4] sm:$0xf]
    %v413 = vld [vmem:[#allocation6 + $0x4f8] sm:$0xf]
    %v414 = vld [vmem:[#allocation6 + $0x4fc] sm:$0xf]
    %v415 = vld [vmem:[#allocation6 + $0x500] sm:$0xf]
    %v416 = vld [vmem:[#allocation6 + $0x504] sm:$0xf]
    %v417 = vld [vmem:[#allocation6 + $0x508] sm:$0xf]
    %v418 = vld [vmem:[#allocation6 + $0x50c] sm:$0xf]
    %v419 = vld [vmem:[#allocation6 + $0x510] sm:$0xf]
    %v420 = vld [vmem:[#allocation6 + $0x514] sm:$0xf]
    %v421 = vld [vmem:[#allocation6 + $0x518] sm:$0xf]
    %v422 = vld [vmem:[#allocation6 + $0x51c] sm:$0xf]
    %v423 = vld [vmem:[#allocation6 + $0x520] sm:$0xf]
    %v424 = vld [vmem:[#allocation6 + $0x524] sm:$0xf]
    %v425 = vld [vmem:[#allocation6 + $0x528] sm:$0xf]
    %v426 = vld [vmem:[#allocation6 + $0x52c] sm:$0xf]
    %v427 = vld [vmem:[#allocation6 + $0x530] sm:$0xf]
    %v428 = vld [vmem:[#allocation6 + $0x534] sm:$0xf]
    %v429 = vld [vmem:[#allocation6 + $0x538] sm:$0xf]
    %v430 = vld [vmem:[#allocation6 + $0x53c] sm:$0xf]
    %v431 = vld [vmem:[#allocation6 + $0x540] sm:$0xf]
    %v432 = vld [vmem:[#allocation6 + $0x544] sm:$0xf]
    %v433 = vld [vmem:[#allocation6 + $0x548] sm:$0xf]
    %v434 = vld [vmem:[#allocation6 + $0x54c] sm:$0xf]
    %v435 = vld [vmem:[#allocation6 + $0x550] sm:$0xf]
    %v436 = vld [vmem:[#allocation6 + $0x554] sm:$0xf]
    %v437 = vld [vmem:[#allocation6 + $0x558] sm:$0xf]
    %v438 = vld [vmem:[#allocation6 + $0x55c] sm:$0xf]
    %v439 = vld [vmem:[#allocation6 + $0x560] sm:$0xf]
    %v440 = vld [vmem:[#allocation6 + $0x564] sm:$0xf]
    %v441 = vld [vmem:[#allocation6 + $0x568] sm:$0xf]
    %v442 = vld [vmem:[#allocation6 + $0x56c] sm:$0xf]
    %v443 = vld [vmem:[#allocation6 + $0x570] sm:$0xf]
    %v444 = vld [vmem:[#allocation6 + $0x574] sm:$0xf]
    %v445 = vld [vmem:[#allocation6 + $0x578] sm:$0xf]
    %v446 = vld [vmem:[#allocation6 + $0x57c] sm:$0xf]
    %v447 = vld [vmem:[#allocation6 + $0x580] sm:$0xf]
    %v448 = vld [vmem:[#allocation6 + $0x584] sm:$0xf]
    %v449 = vld [vmem:[#allocation6 + $0x588] sm:$0xf]
    %v450 = vld [vmem:[#allocation6 + $0x58c] sm:$0xf]
    %v451 = vld [vmem:[#allocation6 + $0x590] sm:$0xf]
    %v452 = vld [vmem:[#allocation6 + $0x594] sm:$0xf]
    %v453 = vld [vmem:[#allocation6 + $0x598] sm:$0xf]
    %v454 = vld [vmem:[#allocation6 + $0x59c] sm:$0xf]
    %v455 = vld [vmem:[#allocation6 + $0x5a0] sm:$0xf]
    %v456 = vld [vmem:[#allocation6 + $0x5a4] sm:$0xf]
    %v457 = vld [vmem:[#allocation6 + $0x5a8] sm:$0xf]
    %v458 = vld [vmem:[#allocation6 + $0x5ac] sm:$0xf]
    %v459 = vld [vmem:[#allocation6 + $0x5b0] sm:$0xf]
    %v460 = vld [vmem:[#allocation6 + $0x5b4] sm:$0xf]
    %v461 = vld [vmem:[#allocation6 + $0x5b8] sm:$0xf]
    %v462 = vld [vmem:[#allocation6 + $0x5bc] sm:$0xf]
    %v463 = vld [vmem:[#allocation6 + $0x5c0] sm:$0xf]
    %v464 = vld [vmem:[#allocation6 + $0x5c4] sm:$0xf]
    %v465 = vld [vmem:[#allocation6 + $0x5c8] sm:$0xf]
    %v466 = vld [vmem:[#allocation6 + $0x5cc] sm:$0xf]
    %v467 = vld [vmem:[#allocation6 + $0x5d0] sm:$0xf]
    %v468 = vld [vmem:[#allocation6 + $0x5d4] sm:$0xf]
    %v469 = vld [vmem:[#allocation6 + $0x5d8] sm:$0xf]
    %v470 = vld [vmem:[#allocation6 + $0x5dc] sm:$0xf]
    %v471 = vld [vmem:[#allocation6 + $0x5e0] sm:$0xf]
    %v472 = vld [vmem:[#allocation6 + $0x5e4] sm:$0xf]
    %v473 = vld [vmem:[#allocation6 + $0x5e8] sm:$0xf]
    %v474 = vld [vmem:[#allocation6 + $0x5ec] sm:$0xf]
    %v475 = vld [vmem:[#allocation6 + $0x5f0] sm:$0xf]
    %v476 = vld [vmem:[#allocation6 + $0x5f4] sm:$0xf]
    %v477 = vld [vmem:[#allocation6 + $0x5f8] sm:$0xf]
    %v478 = vld [vmem:[#allocation6 + $0x5fc] sm:$0xf]
    %v503 = vunpack.c.l.b16 %v71
    %v504 = vunpack.c.h.b16 %v71
    %v505 = vunpack.c.l.b16 %v72
    %v506 = vunpack.c.h.b16 %v72
    %v507 = vunpack.c.l.b16 %v73
    %v508 = vunpack.c.h.b16 %v73
    %v509 = vunpack.c.l.b16 %v74
    %v510 = vunpack.c.h.b16 %v74
    %v511 = vunpack.c.l.b16 %v75
    %v512 = vunpack.c.h.b16 %v75
    %v513 = vunpack.c.l.b16 %v76
    %v514 = vunpack.c.h.b16 %v76
    %v515 = vunpack.c.l.b16 %v77
    %v516 = vunpack.c.h.b16 %v77
    %v517 = vunpack.c.l.b16 %v78
    %v518 = vunpack.c.h.b16 %v78
    %v519 = vunpack.c.l.b16 %v79
    %v520 = vunpack.c.h.b16 %v79
    %v521 = vunpack.c.l.b16 %v80
    %v522 = vunpack.c.h.b16 %v80
    %v523 = vunpack.c.l.b16 %v81
    %v524 = vunpack.c.h.b16 %v81
    %v525 = vunpack.c.l.b16 %v82
    %v526 = vunpack.c.h.b16 %v82
    %v527 = vunpack.c.l.b16 %v83
    %v528 = vunpack.c.h.b16 %v83
    %v529 = vunpack.c.l.b16 %v84
    %v530 = vunpack.c.h.b16 %v84
    %v531 = vunpack.c.l.b16 %v85
    %v532 = vunpack.c.h.b16 %v85
    %v533 = vunpack.c.l.b16 %v86
    %v534 = vunpack.c.h.b16 %v86
    %v535 = vunpack.c.l.b16 %v87
    %v536 = vunpack.c.h.b16 %v87
    %v537 = vunpack.c.l.b16 %v88
    %v538 = vunpack.c.h.b16 %v88
    %v539 = vunpack.c.l.b16 %v89
    %v540 = vunpack.c.h.b16 %v89
    %v541 = vunpack.c.l.b16 %v90
    %v542 = vunpack.c.h.b16 %v90
    %v543 = vunpack.c.l.b16 %v91
    %v544 = vunpack.c.h.b16 %v91
    %v545 = vunpack.c.l.b16 %v92
    %v546 = vunpack.c.h.b16 %v92
    %v547 = vunpack.c.l.b16 %v93
    %v548 = vunpack.c.h.b16 %v93
    %v549 = vunpack.c.l.b16 %v94
    %v550 = vunpack.c.h.b16 %v94
    %v551 = vpack.c.b16 %v527, %v503
    %v552 = vpack.c.b16 %v528, %v504
    %v553 = vpack.c.b16 %v529, %v505
    %v554 = vpack.c.b16 %v530, %v506
    %v555 = vpack.c.b16 %v531, %v507
    %v556 = vpack.c.b16 %v532, %v508
    %v557 = vpack.c.b16 %v533, %v509
    %v558 = vpack.c.b16 %v534, %v510
    %v559 = vpack.c.b16 %v535, %v511
    %v560 = vpack.c.b16 %v536, %v512
    %v561 = vpack.c.b16 %v537, %v513
    %v562 = vpack.c.b16 %v538, %v514
    %v563 = vpack.c.b16 %v539, %v515
    %v564 = vpack.c.b16 %v540, %v516
    %v565 = vpack.c.b16 %v541, %v517
    %v566 = vpack.c.b16 %v542, %v518
    %v567 = vpack.c.b16 %v543, %v519
    %v568 = vpack.c.b16 %v544, %v520
    %v569 = vpack.c.b16 %v545, %v521
    %v570 = vpack.c.b16 %v546, %v522
    %v571 = vpack.c.b16 %v547, %v523
    %v572 = vpack.c.b16 %v548, %v524
    %v573 = vpack.c.b16 %v549, %v525
    %v574 = vpack.c.b16 %v550, %v526
    %v983 = vunpack.c.l.b16 %v95
    %v984 = vunpack.c.l.b16 %v96
    %v985 = vunpack.c.l.b16 %v97
    %v986 = vunpack.c.l.b16 %v98
    %v987 = vunpack.c.l.b16 %v99
    %v988 = vunpack.c.l.b16 %v100
    %v989 = vunpack.c.l.b16 %v101
    %v990 = vunpack.c.l.b16 %v102
    %v991 = vunpack.c.l.b16 %v103
    %v992 = vunpack.c.l.b16 %v104
    %v993 = vunpack.c.l.b16 %v105
    %v994 = vunpack.c.l.b16 %v106
    %v995 = vunpack.c.l.b16 %v107
    %v996 = vunpack.c.l.b16 %v108
    %v997 = vunpack.c.l.b16 %v109
    %v998 = vunpack.c.l.b16 %v110
    %v999 = vunpack.c.l.b16 %v111
    %v1000 = vunpack.c.l.b16 %v112
    %v1001 = vunpack.c.l.b16 %v113
    %v1002 = vunpack.c.l.b16 %v114
    %v1003 = vunpack.c.l.b16 %v115
    %v1004 = vunpack.c.l.b16 %v116
    %v1005 = vunpack.c.l.b16 %v117
    %v1006 = vunpack.c.l.b16 %v118
    %v1007 = vunpack.c.l.b16 %v119
    %v1008 = vunpack.c.l.b16 %v120
    %v1009 = vunpack.c.l.b16 %v121
    %v1010 = vunpack.c.l.b16 %v122
    %v1011 = vunpack.c.l.b16 %v123
    %v1012 = vunpack.c.l.b16 %v124
    %v1013 = vunpack.c.l.b16 %v125
    %v1014 = vunpack.c.l.b16 %v126
    %v1015 = vunpack.c.l.b16 %v127
    %v1016 = vunpack.c.l.b16 %v128
    %v1017 = vunpack.c.l.b16 %v129
    %v1018 = vunpack.c.l.b16 %v130
    %v1019 = vunpack.c.l.b16 %v131
    %v1020 = vunpack.c.l.b16 %v132
    %v1021 = vunpack.c.l.b16 %v133
    %v1022 = vunpack.c.l.b16 %v134
    %v1023 = vunpack.c.l.b16 %v135
    %v1024 = vunpack.c.l.b16 %v136
    %v1025 = vunpack.c.l.b16 %v137
    %v1026 = vunpack.c.l.b16 %v138
    %v1027 = vunpack.c.l.b16 %v139
    %v1028 = vunpack.c.l.b16 %v140
    %v1029 = vunpack.c.l.b16 %v141
    %v1030 = vunpack.c.l.b16 %v142
    %v1031 = vunpack.c.l.b16 %v143
    %v1032 = vunpack.c.l.b16 %v144
    %v1033 = vunpack.c.l.b16 %v145
    %v1034 = vunpack.c.l.b16 %v146
    %v1035 = vunpack.c.l.b16 %v147
    %v1036 = vunpack.c.l.b16 %v148
    %v1037 = vunpack.c.l.b16 %v149
    %v1038 = vunpack.c.l.b16 %v150
    %v1039 = vunpack.c.l.b16 %v151
    %v1040 = vunpack.c.l.b16 %v152
    %v1041 = vunpack.c.l.b16 %v153
    %v1042 = vunpack.c.l.b16 %v154
    %v1043 = vunpack.c.l.b16 %v155
    %v1044 = vunpack.c.l.b16 %v156
    %v1045 = vunpack.c.l.b16 %v157
    %v1046 = vunpack.c.l.b16 %v158
    %v1047 = vunpack.c.l.b16 %v159
    %v1048 = vunpack.c.l.b16 %v160
    %v1049 = vunpack.c.l.b16 %v161
    %v1050 = vunpack.c.l.b16 %v162
    %v1051 = vunpack.c.l.b16 %v163
    %v1052 = vunpack.c.l.b16 %v164
    %v1053 = vunpack.c.l.b16 %v165
    %v1054 = vunpack.c.l.b16 %v166
    %v1055 = vunpack.c.l.b16 %v167
    %v1056 = vunpack.c.l.b16 %v168
    %v1057 = vunpack.c.l.b16 %v169
    %v1058 = vunpack.c.l.b16 %v170
    %v1059 = vunpack.c.l.b16 %v171
    %v1060 = vunpack.c.l.b16 %v172
    %v1061 = vunpack.c.l.b16 %v173
    %v1062 = vunpack.c.l.b16 %v174
    %v1063 = vunpack.c.l.b16 %v175
    %v1064 = vunpack.c.l.b16 %v176
    %v1065 = vunpack.c.l.b16 %v177
    %v1066 = vunpack.c.l.b16 %v178
    %v1067 = vunpack.c.l.b16 %v179
    %v1068 = vunpack.c.l.b16 %v180
    %v1069 = vunpack.c.l.b16 %v181
    %v1070 = vunpack.c.l.b16 %v182
    %v1071 = vunpack.c.l.b16 %v183
    %v1072 = vunpack.c.l.b16 %v184
    %v1073 = vunpack.c.l.b16 %v185
    %v1074 = vunpack.c.l.b16 %v186
    %v1075 = vunpack.c.l.b16 %v187
    %v1076 = vunpack.c.l.b16 %v188
    %v1077 = vunpack.c.l.b16 %v189
    %v1078 = vunpack.c.l.b16 %v190
    %v1079 = vunpack.c.l.b16 %v191
    %v1080 = vunpack.c.l.b16 %v192
    %v1081 = vunpack.c.l.b16 %v193
    %v1082 = vunpack.c.l.b16 %v194
    %v1083 = vunpack.c.l.b16 %v195
    %v1084 = vunpack.c.l.b16 %v196
    %v1085 = vunpack.c.l.b16 %v197
    %v1086 = vunpack.c.l.b16 %v198
    %v1087 = vunpack.c.l.b16 %v199
    %v1088 = vunpack.c.l.b16 %v200
    %v1089 = vunpack.c.l.b16 %v201
    %v1090 = vunpack.c.l.b16 %v202
    %v1091 = vunpack.c.l.b16 %v203
    %v1092 = vunpack.c.l.b16 %v204
    %v1093 = vunpack.c.l.b16 %v205
    %v1094 = vunpack.c.l.b16 %v206
    %v1095 = vunpack.c.l.b16 %v207
    %v1096 = vunpack.c.l.b16 %v208
    %v1097 = vunpack.c.l.b16 %v209
    %v1098 = vunpack.c.l.b16 %v210
    %v1099 = vunpack.c.l.b16 %v211
    %v1100 = vunpack.c.l.b16 %v212
    %v1101 = vunpack.c.l.b16 %v213
    %v1102 = vunpack.c.l.b16 %v214
    %v1103 = vunpack.c.l.b16 %v215
    %v1104 = vunpack.c.l.b16 %v216
    %v1105 = vunpack.c.l.b16 %v217
    %v1106 = vunpack.c.l.b16 %v218
    %v1107 = vunpack.c.l.b16 %v219
    %v1108 = vunpack.c.l.b16 %v220
    %v1109 = vunpack.c.l.b16 %v221
    %v1110 = vunpack.c.l.b16 %v222
    %v1111 = vunpack.c.l.b16 %v223
    %v1112 = vunpack.c.l.b16 %v224
    %v1113 = vunpack.c.l.b16 %v225
    %v1114 = vunpack.c.l.b16 %v226
    %v1115 = vunpack.c.l.b16 %v227
    %v1116 = vunpack.c.l.b16 %v228
    %v1117 = vunpack.c.l.b16 %v229
    %v1118 = vunpack.c.l.b16 %v230
    %v1119 = vunpack.c.l.b16 %v231
    %v1120 = vunpack.c.l.b16 %v232
    %v1121 = vunpack.c.l.b16 %v233
    %v1122 = vunpack.c.l.b16 %v234
    %v1123 = vunpack.c.l.b16 %v235
    %v1124 = vunpack.c.l.b16 %v236
    %v1125 = vunpack.c.l.b16 %v237
    %v1126 = vunpack.c.l.b16 %v238
    %v1127 = vunpack.c.l.b16 %v239
    %v1128 = vunpack.c.l.b16 %v240
    %v1129 = vunpack.c.l.b16 %v241
    %v1130 = vunpack.c.l.b16 %v242
    %v1131 = vunpack.c.l.b16 %v243
    %v1132 = vunpack.c.l.b16 %v244
    %v1133 = vunpack.c.l.b16 %v245
    %v1134 = vunpack.c.l.b16 %v246
    %v1135 = vunpack.c.l.b16 %v247
    %v1136 = vunpack.c.l.b16 %v248
    %v1137 = vunpack.c.l.b16 %v249
    %v1138 = vunpack.c.l.b16 %v250
    %v1139 = vunpack.c.l.b16 %v251
    %v1140 = vunpack.c.l.b16 %v252
    %v1141 = vunpack.c.l.b16 %v253
    %v1142 = vunpack.c.l.b16 %v254
    %v1143 = vunpack.c.l.b16 %v255
    %v1144 = vunpack.c.l.b16 %v256
    %v1145 = vunpack.c.l.b16 %v257
    %v1146 = vunpack.c.l.b16 %v258
    %v1147 = vunpack.c.l.b16 %v259
    %v1148 = vunpack.c.l.b16 %v260
    %v1149 = vunpack.c.l.b16 %v261
    %v1150 = vunpack.c.l.b16 %v262
    %v1151 = vunpack.c.l.b16 %v263
    %v1152 = vunpack.c.l.b16 %v264
    %v1153 = vunpack.c.l.b16 %v265
    %v1154 = vunpack.c.l.b16 %v266
    %v1155 = vunpack.c.l.b16 %v267
    %v1156 = vunpack.c.l.b16 %v268
    %v1157 = vunpack.c.l.b16 %v269
    %v1158 = vunpack.c.l.b16 %v270
    %v1159 = vunpack.c.l.b16 %v271
    %v1160 = vunpack.c.l.b16 %v272
    %v1161 = vunpack.c.l.b16 %v273
    %v1162 = vunpack.c.l.b16 %v274
    %v1163 = vunpack.c.l.b16 %v275
    %v1164 = vunpack.c.l.b16 %v276
    %v1165 = vunpack.c.l.b16 %v277
    %v1166 = vunpack.c.l.b16 %v278
    %v1167 = vunpack.c.l.b16 %v279
    %v1168 = vunpack.c.l.b16 %v280
    %v1169 = vunpack.c.l.b16 %v281
    %v1170 = vunpack.c.l.b16 %v282
    %v1171 = vunpack.c.l.b16 %v283
    %v1172 = vunpack.c.l.b16 %v284
    %v1173 = vunpack.c.l.b16 %v285
    %v1174 = vunpack.c.l.b16 %v286
    %v1175 = vunpack.c.l.b16 %v287
    %v1176 = vunpack.c.l.b16 %v288
    %v1177 = vunpack.c.l.b16 %v289
    %v1178 = vunpack.c.l.b16 %v290
    %v1179 = vunpack.c.l.b16 %v291
    %v1180 = vunpack.c.l.b16 %v292
    %v1181 = vunpack.c.l.b16 %v293
    %v1182 = vunpack.c.l.b16 %v294
    %v1183 = vunpack.c.l.b16 %v295
    %v1184 = vunpack.c.l.b16 %v296
    %v1185 = vunpack.c.l.b16 %v297
    %v1186 = vunpack.c.l.b16 %v298
    %v1187 = vunpack.c.l.b16 %v299
    %v1188 = vunpack.c.l.b16 %v300
    %v1189 = vunpack.c.l.b16 %v301
    %v1190 = vunpack.c.l.b16 %v302
    %v1191 = vunpack.c.l.b16 %v303
    %v1192 = vunpack.c.l.b16 %v304
    %v1193 = vunpack.c.l.b16 %v305
    %v1194 = vunpack.c.l.b16 %v306
    %v1195 = vunpack.c.l.b16 %v307
    %v1196 = vunpack.c.l.b16 %v308
    %v1197 = vunpack.c.l.b16 %v309
    %v1198 = vunpack.c.l.b16 %v310
    %v1199 = vunpack.c.l.b16 %v311
    %v1200 = vunpack.c.l.b16 %v312
    %v1201 = vunpack.c.l.b16 %v313
    %v1202 = vunpack.c.l.b16 %v314
    %v1203 = vunpack.c.l.b16 %v315
    %v1204 = vunpack.c.l.b16 %v316
    %v1205 = vunpack.c.l.b16 %v317
    %v1206 = vunpack.c.l.b16 %v318
    %v1207 = vunpack.c.l.b16 %v319
    %v1208 = vunpack.c.l.b16 %v320
    %v1209 = vunpack.c.l.b16 %v321
    %v1210 = vunpack.c.l.b16 %v322
    %v1211 = vunpack.c.l.b16 %v323
    %v1212 = vunpack.c.l.b16 %v324
    %v1213 = vunpack.c.l.b16 %v325
    %v1214 = vunpack.c.l.b16 %v326
    %v1215 = vunpack.c.l.b16 %v327
    %v1216 = vunpack.c.l.b16 %v328
    %v1217 = vunpack.c.l.b16 %v329
    %v1218 = vunpack.c.l.b16 %v330
    %v1219 = vunpack.c.l.b16 %v331
    %v1220 = vunpack.c.l.b16 %v332
    %v1221 = vunpack.c.l.b16 %v333
    %v1222 = vunpack.c.l.b16 %v334
    %v1223 = vunpack.c.l.b16 %v335
    %v1224 = vunpack.c.l.b16 %v336
    %v1225 = vunpack.c.l.b16 %v337
    %v1226 = vunpack.c.l.b16 %v338
    %v1227 = vunpack.c.l.b16 %v339
    %v1228 = vunpack.c.l.b16 %v340
    %v1229 = vunpack.c.l.b16 %v341
    %v1230 = vunpack.c.l.b16 %v342
    %v1231 = vunpack.c.l.b16 %v343
    %v1232 = vunpack.c.l.b16 %v344
    %v1233 = vunpack.c.l.b16 %v345
    %v1234 = vunpack.c.l.b16 %v346
    %v1235 = vunpack.c.l.b16 %v347
    %v1236 = vunpack.c.l.b16 %v348
    %v1237 = vunpack.c.l.b16 %v349
    %v1238 = vunpack.c.l.b16 %v350
    %v1239 = vunpack.c.l.b16 %v351
    %v1240 = vunpack.c.l.b16 %v352
    %v1241 = vunpack.c.l.b16 %v353
    %v1242 = vunpack.c.l.b16 %v354
    %v1243 = vunpack.c.l.b16 %v355
    %v1244 = vunpack.c.l.b16 %v356
    %v1245 = vunpack.c.l.b16 %v357
    %v1246 = vunpack.c.l.b16 %v358
    %v1247 = vunpack.c.l.b16 %v359
    %v1248 = vunpack.c.l.b16 %v360
    %v1249 = vunpack.c.l.b16 %v361
    %v1250 = vunpack.c.l.b16 %v362
    %v1251 = vunpack.c.l.b16 %v363
    %v1252 = vunpack.c.l.b16 %v364
    %v1253 = vunpack.c.l.b16 %v365
    %v1254 = vunpack.c.l.b16 %v366
    %v1255 = vunpack.c.l.b16 %v367
    %v1256 = vunpack.c.l.b16 %v368
    %v1257 = vunpack.c.l.b16 %v369
    %v1258 = vunpack.c.l.b16 %v370
    %v1259 = vunpack.c.l.b16 %v371
    %v1260 = vunpack.c.l.b16 %v372
    %v1261 = vunpack.c.l.b16 %v373
    %v1262 = vunpack.c.l.b16 %v374
    %v1263 = vunpack.c.l.b16 %v375
    %v1264 = vunpack.c.l.b16 %v376
    %v1265 = vunpack.c.l.b16 %v377
    %v1266 = vunpack.c.l.b16 %v378
    %v1267 = vunpack.c.l.b16 %v379
    %v1268 = vunpack.c.l.b16 %v380
    %v1269 = vunpack.c.l.b16 %v381
    %v1270 = vunpack.c.l.b16 %v382
    %v1271 = vunpack.c.l.b16 %v383
    %v1272 = vunpack.c.l.b16 %v384
    %v1273 = vunpack.c.l.b16 %v385
    %v1274 = vunpack.c.l.b16 %v386
    %v1275 = vunpack.c.l.b16 %v387
    %v1276 = vunpack.c.l.b16 %v388
    %v1277 = vunpack.c.l.b16 %v389
    %v1278 = vunpack.c.l.b16 %v390
    %v1279 = vunpack.c.l.b16 %v391
    %v1280 = vunpack.c.l.b16 %v392
    %v1281 = vunpack.c.l.b16 %v393
    %v1282 = vunpack.c.l.b16 %v394
    %v1283 = vunpack.c.l.b16 %v395
    %v1284 = vunpack.c.l.b16 %v396
    %v1285 = vunpack.c.l.b16 %v397
    %v1286 = vunpack.c.l.b16 %v398
    %v1287 = vunpack.c.l.b16 %v399
    %v1288 = vunpack.c.l.b16 %v400
    %v1289 = vunpack.c.l.b16 %v401
    %v1290 = vunpack.c.l.b16 %v402
    %v1291 = vunpack.c.l.b16 %v403
    %v1292 = vunpack.c.l.b16 %v404
    %v1293 = vunpack.c.l.b16 %v405
    %v1294 = vunpack.c.l.b16 %v406
    %v1295 = vunpack.c.l.b16 %v407
    %v1296 = vunpack.c.l.b16 %v408
    %v1297 = vunpack.c.l.b16 %v409
    %v1298 = vunpack.c.l.b16 %v410
    %v1299 = vunpack.c.l.b16 %v411
    %v1300 = vunpack.c.l.b16 %v412
    %v1301 = vunpack.c.l.b16 %v413
    %v1302 = vunpack.c.l.b16 %v414
    %v1303 = vunpack.c.l.b16 %v415
    %v1304 = vunpack.c.l.b16 %v416
    %v1305 = vunpack.c.l.b16 %v417
    %v1306 = vunpack.c.l.b16 %v418
    %v1307 = vunpack.c.l.b16 %v419
    %v1308 = vunpack.c.l.b16 %v420
    %v1309 = vunpack.c.l.b16 %v421
    %v1310 = vunpack.c.l.b16 %v422
    %v1311 = vunpack.c.l.b16 %v423
    %v1312 = vunpack.c.l.b16 %v424
    %v1313 = vunpack.c.l.b16 %v425
    %v1314 = vunpack.c.l.b16 %v426
    %v1315 = vunpack.c.l.b16 %v427
    %v1316 = vunpack.c.l.b16 %v428
    %v1317 = vunpack.c.l.b16 %v429
    %v1318 = vunpack.c.l.b16 %v430
    %v1319 = vunpack.c.l.b16 %v431
    %v1320 = vunpack.c.l.b16 %v432
    %v1321 = vunpack.c.l.b16 %v433
    %v1322 = vunpack.c.l.b16 %v434
    %v1323 = vunpack.c.l.b16 %v435
    %v1324 = vunpack.c.l.b16 %v436
    %v1325 = vunpack.c.l.b16 %v437
    %v1326 = vunpack.c.l.b16 %v438
    %v1327 = vunpack.c.l.b16 %v439
    %v1328 = vunpack.c.l.b16 %v440
    %v1329 = vunpack.c.l.b16 %v441
    %v1330 = vunpack.c.l.b16 %v442
    %v1331 = vunpack.c.l.b16 %v443
    %v1332 = vunpack.c.l.b16 %v444
    %v1333 = vunpack.c.l.b16 %v445
    %v1334 = vunpack.c.l.b16 %v446
    %v1335 = vunpack.c.l.b16 %v447
    %v1336 = vunpack.c.l.b16 %v448
    %v1337 = vunpack.c.l.b16 %v449
    %v1338 = vunpack.c.l.b16 %v450
    %v1339 = vunpack.c.l.b16 %v451
    %v1340 = vunpack.c.l.b16 %v452
    %v1341 = vunpack.c.l.b16 %v453
    %v1342 = vunpack.c.l.b16 %v454
    %v1343 = vunpack.c.l.b16 %v455
    %v1344 = vunpack.c.l.b16 %v456
    %v1345 = vunpack.c.l.b16 %v457
    %v1346 = vunpack.c.l.b16 %v458
    %v1347 = vunpack.c.l.b16 %v459
    %v1348 = vunpack.c.l.b16 %v460
    %v1349 = vunpack.c.l.b16 %v461
    %v1350 = vunpack.c.l.b16 %v462
    %v1351 = vunpack.c.l.b16 %v463
    %v1352 = vunpack.c.l.b16 %v464
    %v1353 = vunpack.c.l.b16 %v465
    %v1354 = vunpack.c.l.b16 %v466
    %v1355 = vunpack.c.l.b16 %v467
    %v1356 = vunpack.c.l.b16 %v468
    %v1357 = vunpack.c.l.b16 %v469
    %v1358 = vunpack.c.l.b16 %v470
    %v1359 = vunpack.c.l.b16 %v471
    %v1360 = vunpack.c.l.b16 %v472
    %v1361 = vunpack.c.l.b16 %v473
    %v1362 = vunpack.c.l.b16 %v474
    %v1363 = vunpack.c.l.b16 %v475
    %v1364 = vunpack.c.l.b16 %v476
    %v1365 = vunpack.c.l.b16 %v477
    %v1366 = vunpack.c.l.b16 %v478
    %v1367 = vpack.c.b16 %v984, %v983
    %v1368 = vpack.c.b16 %v986, %v985
    %v1369 = vpack.c.b16 %v988, %v987
    %v1370 = vpack.c.b16 %v990, %v989
    %v1371 = vpack.c.b16 %v992, %v991
    %v1372 = vpack.c.b16 %v994, %v993
    %v1373 = vpack.c.b16 %v996, %v995
    %v1374 = vpack.c.b16 %v998, %v997
    %v1375 = vpack.c.b16 %v1000, %v999
    %v1376 = vpack.c.b16 %v1002, %v1001
    %v1377 = vpack.c.b16 %v1004, %v1003
    %v1378 = vpack.c.b16 %v1006, %v1005
    %v1379 = vpack.c.b16 %v1008, %v1007
    %v1380 = vpack.c.b16 %v1010, %v1009
    %v1381 = vpack.c.b16 %v1012, %v1011
    %v1382 = vpack.c.b16 %v1014, %v1013
    %v1383 = vpack.c.b16 %v1016, %v1015
    %v1384 = vpack.c.b16 %v1018, %v1017
    %v1385 = vpack.c.b16 %v1020, %v1019
    %v1386 = vpack.c.b16 %v1022, %v1021
    %v1387 = vpack.c.b16 %v1024, %v1023
    %v1388 = vpack.c.b16 %v1026, %v1025
    %v1389 = vpack.c.b16 %v1028, %v1027
    %v1390 = vpack.c.b16 %v1030, %v1029
    %v1391 = vpack.c.b16 %v1032, %v1031
    %v1392 = vpack.c.b16 %v1034, %v1033
    %v1393 = vpack.c.b16 %v1036, %v1035
    %v1394 = vpack.c.b16 %v1038, %v1037
    %v1395 = vpack.c.b16 %v1040, %v1039
    %v1396 = vpack.c.b16 %v1042, %v1041
    %v1397 = vpack.c.b16 %v1044, %v1043
    %v1398 = vpack.c.b16 %v1046, %v1045
    %v1399 = vpack.c.b16 %v1048, %v1047
    %v1400 = vpack.c.b16 %v1050, %v1049
    %v1401 = vpack.c.b16 %v1052, %v1051
    %v1402 = vpack.c.b16 %v1054, %v1053
    %v1403 = vpack.c.b16 %v1056, %v1055
    %v1404 = vpack.c.b16 %v1058, %v1057
    %v1405 = vpack.c.b16 %v1060, %v1059
    %v1406 = vpack.c.b16 %v1062, %v1061
    %v1407 = vpack.c.b16 %v1064, %v1063
    %v1408 = vpack.c.b16 %v1066, %v1065
    %v1409 = vpack.c.b16 %v1068, %v1067
    %v1410 = vpack.c.b16 %v1070, %v1069
    %v1411 = vpack.c.b16 %v1072, %v1071
    %v1412 = vpack.c.b16 %v1074, %v1073
    %v1413 = vpack.c.b16 %v1076, %v1075
    %v1414 = vpack.c.b16 %v1078, %v1077
    %v1415 = vpack.c.b16 %v1080, %v1079
    %v1416 = vpack.c.b16 %v1082, %v1081
    %v1417 = vpack.c.b16 %v1084, %v1083
    %v1418 = vpack.c.b16 %v1086, %v1085
    %v1419 = vpack.c.b16 %v1088, %v1087
    %v1420 = vpack.c.b16 %v1090, %v1089
    %v1421 = vpack.c.b16 %v1092, %v1091
    %v1422 = vpack.c.b16 %v1094, %v1093
    %v1423 = vpack.c.b16 %v1096, %v1095
    %v1424 = vpack.c.b16 %v1098, %v1097
    %v1425 = vpack.c.b16 %v1100, %v1099
    %v1426 = vpack.c.b16 %v1102, %v1101
    %v1427 = vpack.c.b16 %v1104, %v1103
    %v1428 = vpack.c.b16 %v1106, %v1105
    %v1429 = vpack.c.b16 %v1108, %v1107
    %v1430 = vpack.c.b16 %v1110, %v1109
    %v1431 = vpack.c.b16 %v1112, %v1111
    %v1432 = vpack.c.b16 %v1114, %v1113
    %v1433 = vpack.c.b16 %v1116, %v1115
    %v1434 = vpack.c.b16 %v1118, %v1117
    %v1435 = vpack.c.b16 %v1120, %v1119
    %v1436 = vpack.c.b16 %v1122, %v1121
    %v1437 = vpack.c.b16 %v1124, %v1123
    %v1438 = vpack.c.b16 %v1126, %v1125
    %v1439 = vpack.c.b16 %v1128, %v1127
    %v1440 = vpack.c.b16 %v1130, %v1129
    %v1441 = vpack.c.b16 %v1132, %v1131
    %v1442 = vpack.c.b16 %v1134, %v1133
    %v1443 = vpack.c.b16 %v1136, %v1135
    %v1444 = vpack.c.b16 %v1138, %v1137
    %v1445 = vpack.c.b16 %v1140, %v1139
    %v1446 = vpack.c.b16 %v1142, %v1141
    %v1447 = vpack.c.b16 %v1144, %v1143
    %v1448 = vpack.c.b16 %v1146, %v1145
    %v1449 = vpack.c.b16 %v1148, %v1147
    %v1450 = vpack.c.b16 %v1150, %v1149
    %v1451 = vpack.c.b16 %v1152, %v1151
    %v1452 = vpack.c.b16 %v1154, %v1153
    %v1453 = vpack.c.b16 %v1156, %v1155
    %v1454 = vpack.c.b16 %v1158, %v1157
    %v1455 = vpack.c.b16 %v1160, %v1159
    %v1456 = vpack.c.b16 %v1162, %v1161
    %v1457 = vpack.c.b16 %v1164, %v1163
    %v1458 = vpack.c.b16 %v1166, %v1165
    %v1459 = vpack.c.b16 %v1168, %v1167
    %v1460 = vpack.c.b16 %v1170, %v1169
    %v1461 = vpack.c.b16 %v1172, %v1171
    %v1462 = vpack.c.b16 %v1174, %v1173
    %v1463 = vpack.c.b16 %v1176, %v1175
    %v1464 = vpack.c.b16 %v1178, %v1177
    %v1465 = vpack.c.b16 %v1180, %v1179
    %v1466 = vpack.c.b16 %v1182, %v1181
    %v1467 = vpack.c.b16 %v1184, %v1183
    %v1468 = vpack.c.b16 %v1186, %v1185
    %v1469 = vpack.c.b16 %v1188, %v1187
    %v1470 = vpack.c.b16 %v1190, %v1189
    %v1471 = vpack.c.b16 %v1192, %v1191
    %v1472 = vpack.c.b16 %v1194, %v1193
    %v1473 = vpack.c.b16 %v1196, %v1195
    %v1474 = vpack.c.b16 %v1198, %v1197
    %v1475 = vpack.c.b16 %v1200, %v1199
    %v1476 = vpack.c.b16 %v1202, %v1201
    %v1477 = vpack.c.b16 %v1204, %v1203
    %v1478 = vpack.c.b16 %v1206, %v1205
    %v1479 = vpack.c.b16 %v1208, %v1207
    %v1480 = vpack.c.b16 %v1210, %v1209
    %v1481 = vpack.c.b16 %v1212, %v1211
    %v1482 = vpack.c.b16 %v1214, %v1213
    %v1483 = vpack.c.b16 %v1216, %v1215
    %v1484 = vpack.c.b16 %v1218, %v1217
    %v1485 = vpack.c.b16 %v1220, %v1219
    %v1486 = vpack.c.b16 %v1222, %v1221
    %v1487 = vpack.c.b16 %v1224, %v1223
    %v1488 = vpack.c.b16 %v1226, %v1225
    %v1489 = vpack.c.b16 %v1228, %v1227
    %v1490 = vpack.c.b16 %v1230, %v1229
    %v1491 = vpack.c.b16 %v1232, %v1231
    %v1492 = vpack.c.b16 %v1234, %v1233
    %v1493 = vpack.c.b16 %v1236, %v1235
    %v1494 = vpack.c.b16 %v1238, %v1237
    %v1495 = vpack.c.b16 %v1240, %v1239
    %v1496 = vpack.c.b16 %v1242, %v1241
    %v1497 = vpack.c.b16 %v1244, %v1243
    %v1498 = vpack.c.b16 %v1246, %v1245
    %v1499 = vpack.c.b16 %v1248, %v1247
    %v1500 = vpack.c.b16 %v1250, %v1249
    %v1501 = vpack.c.b16 %v1252, %v1251
    %v1502 = vpack.c.b16 %v1254, %v1253
    %v1503 = vpack.c.b16 %v1256, %v1255
    %v1504 = vpack.c.b16 %v1258, %v1257
    %v1505 = vpack.c.b16 %v1260, %v1259
    %v1506 = vpack.c.b16 %v1262, %v1261
    %v1507 = vpack.c.b16 %v1264, %v1263
    %v1508 = vpack.c.b16 %v1266, %v1265
    %v1509 = vpack.c.b16 %v1268, %v1267
    %v1510 = vpack.c.b16 %v1270, %v1269
    %v1511 = vpack.c.b16 %v1272, %v1271
    %v1512 = vpack.c.b16 %v1274, %v1273
    %v1513 = vpack.c.b16 %v1276, %v1275
    %v1514 = vpack.c.b16 %v1278, %v1277
    %v1515 = vpack.c.b16 %v1280, %v1279
    %v1516 = vpack.c.b16 %v1282, %v1281
    %v1517 = vpack.c.b16 %v1284, %v1283
    %v1518 = vpack.c.b16 %v1286, %v1285
    %v1519 = vpack.c.b16 %v1288, %v1287
    %v1520 = vpack.c.b16 %v1290, %v1289
    %v1521 = vpack.c.b16 %v1292, %v1291
    %v1522 = vpack.c.b16 %v1294, %v1293
    %v1523 = vpack.c.b16 %v1296, %v1295
    %v1524 = vpack.c.b16 %v1298, %v1297
    %v1525 = vpack.c.b16 %v1300, %v1299
    %v1526 = vpack.c.b16 %v1302, %v1301
    %v1527 = vpack.c.b16 %v1304, %v1303
    %v1528 = vpack.c.b16 %v1306, %v1305
    %v1529 = vpack.c.b16 %v1308, %v1307
    %v1530 = vpack.c.b16 %v1310, %v1309
    %v1531 = vpack.c.b16 %v1312, %v1311
    %v1532 = vpack.c.b16 %v1314, %v1313
    %v1533 = vpack.c.b16 %v1316, %v1315
    %v1534 = vpack.c.b16 %v1318, %v1317
    %v1535 = vpack.c.b16 %v1320, %v1319
    %v1536 = vpack.c.b16 %v1322, %v1321
    %v1537 = vpack.c.b16 %v1324, %v1323
    %v1538 = vpack.c.b16 %v1326, %v1325
    %v1539 = vpack.c.b16 %v1328, %v1327
    %v1540 = vpack.c.b16 %v1330, %v1329
    %v1541 = vpack.c.b16 %v1332, %v1331
    %v1542 = vpack.c.b16 %v1334, %v1333
    %v1543 = vpack.c.b16 %v1336, %v1335
    %v1544 = vpack.c.b16 %v1338, %v1337
    %v1545 = vpack.c.b16 %v1340, %v1339
    %v1546 = vpack.c.b16 %v1342, %v1341
    %v1547 = vpack.c.b16 %v1344, %v1343
    %v1548 = vpack.c.b16 %v1346, %v1345
    %v1549 = vpack.c.b16 %v1348, %v1347
    %v1550 = vpack.c.b16 %v1350, %v1349
    %v1551 = vpack.c.b16 %v1352, %v1351
    %v1552 = vpack.c.b16 %v1354, %v1353
    %v1553 = vpack.c.b16 %v1356, %v1355
    %v1554 = vpack.c.b16 %v1358, %v1357
    %v1555 = vpack.c.b16 %v1360, %v1359
    %v1556 = vpack.c.b16 %v1362, %v1361
    %v1557 = vpack.c.b16 %v1364, %v1363
    %v1558 = vpack.c.b16 %v1366, %v1365
    %1751 = vmatprep.subr.bf16.mxu0 0
    %1752 = vmatpush1.bf16.msra.mxu0 %v1367
    %1753 = vmatprep.subr.bf16.mxu0 0
    %1754 = vmatpush1.bf16.msra.mxu0 %v1368
    %1755 = vmatprep.subr.bf16.mxu0 0
    %1756 = vmatpush1.bf16.msra.mxu0 %v1369
    %1757 = vmatprep.subr.bf16.mxu0 0
    %1758 = vmatpush1.bf16.msra.mxu0 %v1370
    %1759 = vmatprep.subr.bf16.mxu0 0
    %1760 = vmatpush1.bf16.msra.mxu0 %v1371
    %1761 = vmatprep.subr.bf16.mxu0 0
    %1762 = vmatpush1.bf16.msra.mxu0 %v1372
    %1763 = vmatprep.subr.bf16.mxu0 0
    %1764 = vmatpush1.bf16.msra.mxu0 %v1373
    %1765 = vmatprep.subr.bf16.mxu0 0
    %1766 = vmatpush1.bf16.msra.mxu0 %v1374
    %1767 = vmatprep.subr.bf16.mxu0 0
    %1768 = vmatpush1.bf16.msra.mxu0 %v1375
    %1769 = vmatprep.subr.bf16.mxu0 0
    %1770 = vmatpush1.bf16.msra.mxu0 %v1376
    %1771 = vmatprep.subr.bf16.mxu0 0
    %1772 = vmatpush1.bf16.msra.mxu0 %v1377
    %1773 = vmatprep.subr.bf16.mxu0 0
    %1774 = vmatpush1.bf16.msra.mxu0 %v1378
    %1775 = vmatprep.subr.bf16.mxu0 0
    %1776 = vmatpush1.bf16.msra.mxu0 %v1379
    %1777 = vmatprep.subr.bf16.mxu0 0
    %1778 = vmatpush1.bf16.msra.mxu0 %v1380
    %1779 = vmatprep.subr.bf16.mxu0 0
    %1780 = vmatpush1.bf16.msra.mxu0 %v1381
    %1781 = vmatprep.subr.bf16.mxu0 0
    %1782 = vmatpush1.bf16.msra.mxu0 %v1382
    %1783 = vmatprep.mubr.bf16.mxu0 %v552
    %1784 = vmatmul.mubr.bf16.gmra.mrb[0].mxu0 %v551
    %v1785 = vpop.f32.mrb[0].mxu0
    %v1786 = vadd.f32 0.0, %v1785
    %v1787 = vpop.f32.mrb[0].mxu0
    %v1788 = vpop.f32.mrb[0].mxu0
    %v1789 = vadd.f32 0.0, %v1788
    %v1790 = vpop.f32.mrb[0].mxu0
    %1791 = vdwg.mxu0
    %1792 = vmatprep.subr.bf16.mxu0 0
    %1793 = vmatpush1.bf16.msra.mxu0 %v1383
    %1794 = vmatprep.subr.bf16.mxu0 0
    %1795 = vmatpush1.bf16.msra.mxu0 %v1384
    %1796 = vmatprep.subr.bf16.mxu0 0
    %1797 = vmatpush1.bf16.msra.mxu0 %v1385
    %1798 = vmatprep.subr.bf16.mxu0 0
    %1799 = vmatpush1.bf16.msra.mxu0 %v1386
    %1800 = vmatprep.subr.bf16.mxu0 0
    %1801 = vmatpush1.bf16.msra.mxu0 %v1387
    %1802 = vmatprep.subr.bf16.mxu0 0
    %1803 = vmatpush1.bf16.msra.mxu0 %v1388
    %1804 = vmatprep.subr.bf16.mxu0 0
    %1805 = vmatpush1.bf16.msra.mxu0 %v1389
    %1806 = vmatprep.subr.bf16.mxu0 0
    %1807 = vmatpush1.bf16.msra.mxu0 %v1390
    %1808 = vmatprep.subr.bf16.mxu0 0
    %1809 = vmatpush1.bf16.msra.mxu0 %v1391
    %1810 = vmatprep.subr.bf16.mxu0 0
    %1811 = vmatpush1.bf16.msra.mxu0 %v1392
    %1812 = vmatprep.subr.bf16.mxu0 0
    %1813 = vmatpush1.bf16.msra.mxu0 %v1393
    %1814 = vmatprep.subr.bf16.mxu0 0
    %1815 = vmatpush1.bf16.msra.mxu0 %v1394
    %1816 = vmatprep.subr.bf16.mxu0 0
    %1817 = vmatpush1.bf16.msra.mxu0 %v1395
    %1818 = vmatprep.subr.bf16.mxu0 0
    %1819 = vmatpush1.bf16.msra.mxu0 %v1396
    %1820 = vmatprep.subr.bf16.mxu0 0
    %1821 = vmatpush1.bf16.msra.mxu0 %v1397
    %1822 = vmatprep.subr.bf16.mxu0 0
    %1823 = vmatpush1.bf16.msra.mxu0 %v1398
    %1824 = vmatprep.mubr.bf16.mxu0 %v554
    %1825 = vmatmul.mubr.bf16.gmra.mrb[0].mxu0 %v553
    %v1826 = vpop.f32.mrb[0].mxu0
    %v1827 = vadd.f32 %v1786, %v1826
    %v1828 = vpop.f32.mrb[0].mxu0
    %v1829 = vpop.f32.mrb[0].mxu0
    %v1830 = vadd.f32 %v1789, %v1829
    %v1831 = vpop.f32.mrb[0].mxu0
    %1832 = vdwg.mxu0
    %1833 = vmatprep.subr.bf16.mxu0 0
    %1834 = vmatpush1.bf16.msra.mxu0 %v1399
    %1835 = vmatprep.subr.bf16.mxu0 0
    %1836 = vmatpush1.bf16.msra.mxu0 %v1400
    %1837 = vmatprep.subr.bf16.mxu0 0
    %1838 = vmatpush1.bf16.msra.mxu0 %v1401
    %1839 = vmatprep.subr.bf16.mxu0 0
    %1840 = vmatpush1.bf16.msra.mxu0 %v1402
    %1841 = vmatprep.subr.bf16.mxu0 0
    %1842 = vmatpush1.bf16.msra.mxu0 %v1403
    %1843 = vmatprep.subr.bf16.mxu0 0
    %1844 = vmatpush1.bf16.msra.mxu0 %v1404
    %1845 = vmatprep.subr.bf16.mxu0 0
    %1846 = vmatpush1.bf16.msra.mxu0 %v1405
    %1847 = vmatprep.subr.bf16.mxu0 0
    %1848 = vmatpush1.bf16.msra.mxu0 %v1406
    %1849 = vmatprep.subr.bf16.mxu0 0
    %1850 = vmatpush1.bf16.msra.mxu0 %v1407
    %1851 = vmatprep.subr.bf16.mxu0 0
    %1852 = vmatpush1.bf16.msra.mxu0 %v1408
    %1853 = vmatprep.subr.bf16.mxu0 0
    %1854 = vmatpush1.bf16.msra.mxu0 %v1409
    %1855 = vmatprep.subr.bf16.mxu0 0
    %1856 = vmatpush1.bf16.msra.mxu0 %v1410
    %1857 = vmatprep.subr.bf16.mxu0 0
    %1858 = vmatpush1.bf16.msra.mxu0 %v1411
    %1859 = vmatprep.subr.bf16.mxu0 0
    %1860 = vmatpush1.bf16.msra.mxu0 %v1412
    %1861 = vmatprep.subr.bf16.mxu0 0
    %1862 = vmatpush1.bf16.msra.mxu0 %v1413
    %1863 = vmatprep.subr.bf16.mxu0 0
    %1864 = vmatpush1.bf16.msra.mxu0 %v1414
    %1865 = vmatprep.mubr.bf16.mxu0 %v556
    %1866 = vmatmul.mubr.bf16.gmra.mrb[0].mxu0 %v555
    %v1867 = vpop.f32.mrb[0].mxu0
    %v1868 = vadd.f32 %v1827, %v1867
    %v1869 = vpop.f32.mrb[0].mxu0
    %v1870 = vpop.f32.mrb[0].mxu0
    %v1871 = vadd.f32 %v1830, %v1870
    %v1872 = vpop.f32.mrb[0].mxu0
    %1873 = vdwg.mxu0
    %1874 = vmatprep.subr.bf16.mxu0 0
    %1875 = vmatpush1.bf16.msra.mxu0 %v1415
    %1876 = vmatprep.subr.bf16.mxu0 0
    %1877 = vmatpush1.bf16.msra.mxu0 %v1416
    %1878 = vmatprep.subr.bf16.mxu0 0
    %1879 = vmatpush1.bf16.msra.mxu0 %v1417
    %1880 = vmatprep.subr.bf16.mxu0 0
    %1881 = vmatpush1.bf16.msra.mxu0 %v1418
    %1882 = vmatprep.subr.bf16.mxu0 0
    %1883 = vmatpush1.bf16.msra.mxu0 %v1419
    %1884 = vmatprep.subr.bf16.mxu0 0
    %1885 = vmatpush1.bf16.msra.mxu0 %v1420
    %1886 = vmatprep.subr.bf16.mxu0 0
    %1887 = vmatpush1.bf16.msra.mxu0 %v1421
    %1888 = vmatprep.subr.bf16.mxu0 0
    %1889 = vmatpush1.bf16.msra.mxu0 %v1422
    %1890 = vmatprep.subr.bf16.mxu0 0
    %1891 = vmatpush1.bf16.msra.mxu0 %v1423
    %1892 = vmatprep.subr.bf16.mxu0 0
    %1893 = vmatpush1.bf16.msra.mxu0 %v1424
    %1894 = vmatprep.subr.bf16.mxu0 0
    %1895 = vmatpush1.bf16.msra.mxu0 %v1425
    %1896 = vmatprep.subr.bf16.mxu0 0
    %1897 = vmatpush1.bf16.msra.mxu0 %v1426
    %1898 = vmatprep.subr.bf16.mxu0 0
    %1899 = vmatpush1.bf16.msra.mxu0 %v1427
    %1900 = vmatprep.subr.bf16.mxu0 0
    %1901 = vmatpush1.bf16.msra.mxu0 %v1428
    %1902 = vmatprep.subr.bf16.mxu0 0
    %1903 = vmatpush1.bf16.msra.mxu0 %v1429
    %1904 = vmatprep.subr.bf16.mxu0 0
    %1905 = vmatpush1.bf16.msra.mxu0 %v1430
    %1906 = vmatprep.mubr.bf16.mxu0 %v558
    %1907 = vmatmul.mubr.bf16.gmra.mrb[0].mxu0 %v557
    %v1908 = vpop.f32.mrb[0].mxu0
    %v1909 = vadd.f32 %v1868, %v1908
    %v1910 = vpop.f32.mrb[0].mxu0
    %v1911 = vpop.f32.mrb[0].mxu0
    %v1912 = vadd.f32 %v1871, %v1911
    %v1913 = vpop.f32.mrb[0].mxu0
    %1914 = vdwg.mxu0
    %1915 = vmatprep.subr.bf16.mxu0 0
    %1916 = vmatpush1.bf16.msra.mxu0 %v1431
    %1917 = vmatprep.subr.bf16.mxu0 0
    %1918 = vmatpush1.bf16.msra.mxu0 %v1432
    %1919 = vmatprep.subr.bf16.mxu0 0
    %1920 = vmatpush1.bf16.msra.mxu0 %v1433
    %1921 = vmatprep.subr.bf16.mxu0 0
    %1922 = vmatpush1.bf16.msra.mxu0 %v1434
    %1923 = vmatprep.subr.bf16.mxu0 0
    %1924 = vmatpush1.bf16.msra.mxu0 %v1435
    %1925 = vmatprep.subr.bf16.mxu0 0
    %1926 = vmatpush1.bf16.msra.mxu0 %v1436
    %1927 = vmatprep.subr.bf16.mxu0 0
    %1928 = vmatpush1.bf16.msra.mxu0 %v1437
    %1929 = vmatprep.subr.bf16.mxu0 0
    %1930 = vmatpush1.bf16.msra.mxu0 %v1438
    %1931 = vmatprep.subr.bf16.mxu0 0
    %1932 = vmatpush1.bf16.msra.mxu0 %v1439
    %1933 = vmatprep.subr.bf16.mxu0 0
    %1934 = vmatpush1.bf16.msra.mxu0 %v1440
    %1935 = vmatprep.subr.bf16.mxu0 0
    %1936 = vmatpush1.bf16.msra.mxu0 %v1441
    %1937 = vmatprep.subr.bf16.mxu0 0
    %1938 = vmatpush1.bf16.msra.mxu0 %v1442
    %1939 = vmatprep.subr.bf16.mxu0 0
    %1940 = vmatpush1.bf16.msra.mxu0 %v1443
    %1941 = vmatprep.subr.bf16.mxu0 0
    %1942 = vmatpush1.bf16.msra.mxu0 %v1444
    %1943 = vmatprep.subr.bf16.mxu0 0
    %1944 = vmatpush1.bf16.msra.mxu0 %v1445
    %1945 = vmatprep.subr.bf16.mxu0 0
    %1946 = vmatpush1.bf16.msra.mxu0 %v1446
    %1947 = vmatprep.mubr.bf16.mxu0 %v560
    %1948 = vmatmul.mubr.bf16.gmra.mrb[0].mxu0 %v559
    %v1949 = vpop.f32.mrb[0].mxu0
    %v1950 = vadd.f32 %v1909, %v1949
    %v1951 = vpop.f32.mrb[0].mxu0
    %v1952 = vpop.f32.mrb[0].mxu0
    %v1953 = vadd.f32 %v1912, %v1952
    %v1954 = vpop.f32.mrb[0].mxu0
    %1955 = vdwg.mxu0
    %1956 = vmatprep.subr.bf16.mxu0 0
    %1957 = vmatpush1.bf16.msra.mxu0 %v1447
    %1958 = vmatprep.subr.bf16.mxu0 0
    %1959 = vmatpush1.bf16.msra.mxu0 %v1448
    %1960 = vmatprep.subr.bf16.mxu0 0
    %1961 = vmatpush1.bf16.msra.mxu0 %v1449
    %1962 = vmatprep.subr.bf16.mxu0 0
    %1963 = vmatpush1.bf16.msra.mxu0 %v1450
    %1964 = vmatprep.subr.bf16.mxu0 0
    %1965 = vmatpush1.bf16.msra.mxu0 %v1451
    %1966 = vmatprep.subr.bf16.mxu0 0
    %1967 = vmatpush1.bf16.msra.mxu0 %v1452
    %1968 = vmatprep.subr.bf16.mxu0 0
    %1969 = vmatpush1.bf16.msra.mxu0 %v1453
    %1970 = vmatprep.subr.bf16.mxu0 0
    %1971 = vmatpush1.bf16.msra.mxu0 %v1454
    %1972 = vmatprep.subr.bf16.mxu0 0
    %1973 = vmatpush1.bf16.msra.mxu0 %v1455
    %1974 = vmatprep.subr.bf16.mxu0 0
    %1975 = vmatpush1.bf16.msra.mxu0 %v1456
    %1976 = vmatprep.subr.bf16.mxu0 0
    %1977 = vmatpush1.bf16.msra.mxu0 %v1457
    %1978 = vmatprep.subr.bf16.mxu0 0
    %1979 = vmatpush1.bf16.msra.mxu0 %v1458
    %1980 = vmatprep.subr.bf16.mxu0 0
    %1981 = vmatpush1.bf16.msra.mxu0 %v1459
    %1982 = vmatprep.subr.bf16.mxu0 0
    %1983 = vmatpush1.bf16.msra.mxu0 %v1460
    %1984 = vmatprep.subr.bf16.mxu0 0
    %1985 = vmatpush1.bf16.msra.mxu0 %v1461
    %1986 = vmatprep.subr.bf16.mxu0 0
    %1987 = vmatpush1.bf16.msra.mxu0 %v1462
    %1988 = vmatprep.mubr.bf16.mxu0 %v562
    %1989 = vmatmul.mubr.bf16.gmra.mrb[0].mxu0 %v561
    %v1990 = vpop.f32.mrb[0].mxu0
    %v1991 = vadd.f32 %v1950, %v1990
    %v1992 = vpop.f32.mrb[0].mxu0
    %v1993 = vpop.f32.mrb[0].mxu0
    %v1994 = vadd.f32 %v1953, %v1993
    %v1995 = vpop.f32.mrb[0].mxu0
    %1996 = vdwg.mxu0
    %1997 = vmatprep.subr.bf16.mxu0 0
    %1998 = vmatpush1.bf16.msra.mxu0 %v1463
    %1999 = vmatprep.subr.bf16.mxu0 0
    %2000 = vmatpush1.bf16.msra.mxu0 %v1464
    %2001 = vmatprep.subr.bf16.mxu0 0
    %2002 = vmatpush1.bf16.msra.mxu0 %v1465
    %2003 = vmatprep.subr.bf16.mxu0 0
    %2004 = vmatpush1.bf16.msra.mxu0 %v1466
    %2005 = vmatprep.subr.bf16.mxu0 0
    %2006 = vmatpush1.bf16.msra.mxu0 %v1467
    %2007 = vmatprep.subr.bf16.mxu0 0
    %2008 = vmatpush1.bf16.msra.mxu0 %v1468
    %2009 = vmatprep.subr.bf16.mxu0 0
    %2010 = vmatpush1.bf16.msra.mxu0 %v1469
    %2011 = vmatprep.subr.bf16.mxu0 0
    %2012 = vmatpush1.bf16.msra.mxu0 %v1470
    %2013 = vmatprep.subr.bf16.mxu0 0
    %2014 = vmatpush1.bf16.msra.mxu0 %v1471
    %2015 = vmatprep.subr.bf16.mxu0 0
    %2016 = vmatpush1.bf16.msra.mxu0 %v1472
    %2017 = vmatprep.subr.bf16.mxu0 0
    %2018 = vmatpush1.bf16.msra.mxu0 %v1473
    %2019 = vmatprep.subr.bf16.mxu0 0
    %2020 = vmatpush1.bf16.msra.mxu0 %v1474
    %2021 = vmatprep.subr.bf16.mxu0 0
    %2022 = vmatpush1.bf16.msra.mxu0 %v1475
    %2023 = vmatprep.subr.bf16.mxu0 0
    %2024 = vmatpush1.bf16.msra.mxu0 %v1476
    %2025 = vmatprep.subr.bf16.mxu0 0
    %2026 = vmatpush1.bf16.msra.mxu0 %v1477
    %2027 = vmatprep.subr.bf16.mxu0 0
    %2028 = vmatpush1.bf16.msra.mxu0 %v1478
    %2029 = vmatprep.mubr.bf16.mxu0 %v564
    %2030 = vmatmul.mubr.bf16.gmra.mrb[0].mxu0 %v563
    %v2031 = vpop.f32.mrb[0].mxu0
    %v2032 = vadd.f32 %v1991, %v2031
    %v2033 = vpop.f32.mrb[0].mxu0
    %v2034 = vpop.f32.mrb[0].mxu0
    %v2035 = vadd.f32 %v1994, %v2034
    %v2036 = vpop.f32.mrb[0].mxu0
    %2037 = vdwg.mxu0
    %2038 = vmatprep.subr.bf16.mxu0 0
    %2039 = vmatpush1.bf16.msra.mxu0 %v1479
    %2040 = vmatprep.subr.bf16.mxu0 0
    %2041 = vmatpush1.bf16.msra.mxu0 %v1480
    %2042 = vmatprep.subr.bf16.mxu0 0
    %2043 = vmatpush1.bf16.msra.mxu0 %v1481
    %2044 = vmatprep.subr.bf16.mxu0 0
    %2045 = vmatpush1.bf16.msra.mxu0 %v1482
    %2046 = vmatprep.subr.bf16.mxu0 0
    %2047 = vmatpush1.bf16.msra.mxu0 %v1483
    %2048 = vmatprep.subr.bf16.mxu0 0
    %2049 = vmatpush1.bf16.msra.mxu0 %v1484
    %2050 = vmatprep.subr.bf16.mxu0 0
    %2051 = vmatpush1.bf16.msra.mxu0 %v1485
    %2052 = vmatprep.subr.bf16.mxu0 0
    %2053 = vmatpush1.bf16.msra.mxu0 %v1486
    %2054 = vmatprep.subr.bf16.mxu0 0
    %2055 = vmatpush1.bf16.msra.mxu0 %v1487
    %2056 = vmatprep.subr.bf16.mxu0 0
    %2057 = vmatpush1.bf16.msra.mxu0 %v1488
    %2058 = vmatprep.subr.bf16.mxu0 0
    %2059 = vmatpush1.bf16.msra.mxu0 %v1489
    %2060 = vmatprep.subr.bf16.mxu0 0
    %2061 = vmatpush1.bf16.msra.mxu0 %v1490
    %2062 = vmatprep.subr.bf16.mxu0 0
    %2063 = vmatpush1.bf16.msra.mxu0 %v1491
    %2064 = vmatprep.subr.bf16.mxu0 0
    %2065 = vmatpush1.bf16.msra.mxu0 %v1492
    %2066 = vmatprep.subr.bf16.mxu0 0
    %2067 = vmatpush1.bf16.msra.mxu0 %v1493
    %2068 = vmatprep.subr.bf16.mxu0 0
    %2069 = vmatpush1.bf16.msra.mxu0 %v1494
    %2070 = vmatprep.mubr.bf16.mxu0 %v566
    %2071 = vmatmul.mubr.bf16.gmra.mrb[0].mxu0 %v565
    %v2072 = vpop.f32.mrb[0].mxu0
    %v2073 = vadd.f32 %v2032, %v2072
    %v2074 = vpop.f32.mrb[0].mxu0
    %v2075 = vpop.f32.mrb[0].mxu0
    %v2076 = vadd.f32 %v2035, %v2075
    %v2077 = vpop.f32.mrb[0].mxu0
    %2078 = vdwg.mxu0
    %2079 = vmatprep.subr.bf16.mxu0 0
    %2080 = vmatpush1.bf16.msra.mxu0 %v1495
    %2081 = vmatprep.subr.bf16.mxu0 0
    %2082 = vmatpush1.bf16.msra.mxu0 %v1496
    %2083 = vmatprep.subr.bf16.mxu0 0
    %2084 = vmatpush1.bf16.msra.mxu0 %v1497
    %2085 = vmatprep.subr.bf16.mxu0 0
    %2086 = vmatpush1.bf16.msra.mxu0 %v1498
    %2087 = vmatprep.subr.bf16.mxu0 0
    %2088 = vmatpush1.bf16.msra.mxu0 %v1499
    %2089 = vmatprep.subr.bf16.mxu0 0
    %2090 = vmatpush1.bf16.msra.mxu0 %v1500
    %2091 = vmatprep.subr.bf16.mxu0 0
    %2092 = vmatpush1.bf16.msra.mxu0 %v1501
    %2093 = vmatprep.subr.bf16.mxu0 0
    %2094 = vmatpush1.bf16.msra.mxu0 %v1502
    %2095 = vmatprep.subr.bf16.mxu0 0
    %2096 = vmatpush1.bf16.msra.mxu0 %v1503
    %2097 = vmatprep.subr.bf16.mxu0 0
    %2098 = vmatpush1.bf16.msra.mxu0 %v1504
    %2099 = vmatprep.subr.bf16.mxu0 0
    %2100 = vmatpush1.bf16.msra.mxu0 %v1505
    %2101 = vmatprep.subr.bf16.mxu0 0
    %2102 = vmatpush1.bf16.msra.mxu0 %v1506
    %2103 = vmatprep.subr.bf16.mxu0 0
    %2104 = vmatpush1.bf16.msra.mxu0 %v1507
    %2105 = vmatprep.subr.bf16.mxu0 0
    %2106 = vmatpush1.bf16.msra.mxu0 %v1508
    %2107 = vmatprep.subr.bf16.mxu0 0
    %2108 = vmatpush1.bf16.msra.mxu0 %v1509
    %2109 = vmatprep.subr.bf16.mxu0 0
    %2110 = vmatpush1.bf16.msra.mxu0 %v1510
    %2111 = vmatprep.mubr.bf16.mxu0 %v568
    %2112 = vmatmul.mubr.bf16.gmra.mrb[0].mxu0 %v567
    %v2113 = vpop.f32.mrb[0].mxu0
    %v2114 = vadd.f32 %v2073, %v2113
    %v2115 = vpop.f32.mrb[0].mxu0
    %v2116 = vpop.f32.mrb[0].mxu0
    %v2117 = vadd.f32 %v2076, %v2116
    %v2118 = vpop.f32.mrb[0].mxu0
    %2119 = vdwg.mxu0
    %2120 = vmatprep.subr.bf16.mxu0 0
    %2121 = vmatpush1.bf16.msra.mxu0 %v1511
    %2122 = vmatprep.subr.bf16.mxu0 0
    %2123 = vmatpush1.bf16.msra.mxu0 %v1512
    %2124 = vmatprep.subr.bf16.mxu0 0
    %2125 = vmatpush1.bf16.msra.mxu0 %v1513
    %2126 = vmatprep.subr.bf16.mxu0 0
    %2127 = vmatpush1.bf16.msra.mxu0 %v1514
    %2128 = vmatprep.subr.bf16.mxu0 0
    %2129 = vmatpush1.bf16.msra.mxu0 %v1515
    %2130 = vmatprep.subr.bf16.mxu0 0
    %2131 = vmatpush1.bf16.msra.mxu0 %v1516
    %2132 = vmatprep.subr.bf16.mxu0 0
    %2133 = vmatpush1.bf16.msra.mxu0 %v1517
    %2134 = vmatprep.subr.bf16.mxu0 0
    %2135 = vmatpush1.bf16.msra.mxu0 %v1518
    %2136 = vmatprep.subr.bf16.mxu0 0
    %2137 = vmatpush1.bf16.msra.mxu0 %v1519
    %2138 = vmatprep.subr.bf16.mxu0 0
    %2139 = vmatpush1.bf16.msra.mxu0 %v1520
    %2140 = vmatprep.subr.bf16.mxu0 0
    %2141 = vmatpush1.bf16.msra.mxu0 %v1521
    %2142 = vmatprep.subr.bf16.mxu0 0
    %2143 = vmatpush1.bf16.msra.mxu0 %v1522
    %2144 = vmatprep.subr.bf16.mxu0 0
    %2145 = vmatpush1.bf16.msra.mxu0 %v1523
    %2146 = vmatprep.subr.bf16.mxu0 0
    %2147 = vmatpush1.bf16.msra.mxu0 %v1524
    %2148 = vmatprep.subr.bf16.mxu0 0
    %2149 = vmatpush1.bf16.msra.mxu0 %v1525
    %2150 = vmatprep.subr.bf16.mxu0 0
    %2151 = vmatpush1.bf16.msra.mxu0 %v1526
    %2152 = vmatprep.mubr.bf16.mxu0 %v570
    %2153 = vmatmul.mubr.bf16.gmra.mrb[0].mxu0 %v569
    %v2154 = vpop.f32.mrb[0].mxu0
    %v2155 = vadd.f32 %v2114, %v2154
    %v2156 = vpop.f32.mrb[0].mxu0
    %v2157 = vpop.f32.mrb[0].mxu0
    %v2158 = vadd.f32 %v2117, %v2157
    %v2159 = vpop.f32.mrb[0].mxu0
    %2160 = vdwg.mxu0
    %2161 = vmatprep.subr.bf16.mxu0 0
    %2162 = vmatpush1.bf16.msra.mxu0 %v1527
    %2163 = vmatprep.subr.bf16.mxu0 0
    %2164 = vmatpush1.bf16.msra.mxu0 %v1528
    %2165 = vmatprep.subr.bf16.mxu0 0
    %2166 = vmatpush1.bf16.msra.mxu0 %v1529
    %2167 = vmatprep.subr.bf16.mxu0 0
    %2168 = vmatpush1.bf16.msra.mxu0 %v1530
    %2169 = vmatprep.subr.bf16.mxu0 0
    %2170 = vmatpush1.bf16.msra.mxu0 %v1531
    %2171 = vmatprep.subr.bf16.mxu0 0
    %2172 = vmatpush1.bf16.msra.mxu0 %v1532
    %2173 = vmatprep.subr.bf16.mxu0 0
    %2174 = vmatpush1.bf16.msra.mxu0 %v1533
    %2175 = vmatprep.subr.bf16.mxu0 0
    %2176 = vmatpush1.bf16.msra.mxu0 %v1534
    %2177 = vmatprep.subr.bf16.mxu0 0
    %2178 = vmatpush1.bf16.msra.mxu0 %v1535
    %2179 = vmatprep.subr.bf16.mxu0 0
    %2180 = vmatpush1.bf16.msra.mxu0 %v1536
    %2181 = vmatprep.subr.bf16.mxu0 0
    %2182 = vmatpush1.bf16.msra.mxu0 %v1537
    %2183 = vmatprep.subr.bf16.mxu0 0
    %2184 = vmatpush1.bf16.msra.mxu0 %v1538
    %2185 = vmatprep.subr.bf16.mxu0 0
    %2186 = vmatpush1.bf16.msra.mxu0 %v1539
    %2187 = vmatprep.subr.bf16.mxu0 0
    %2188 = vmatpush1.bf16.msra.mxu0 %v1540
    %2189 = vmatprep.subr.bf16.mxu0 0
    %2190 = vmatpush1.bf16.msra.mxu0 %v1541
    %2191 = vmatprep.subr.bf16.mxu0 0
    %2192 = vmatpush1.bf16.msra.mxu0 %v1542
    %2193 = vmatprep.mubr.bf16.mxu0 %v572
    %2194 = vmatmul.mubr.bf16.gmra.mrb[0].mxu0 %v571
    %v2195 = vpop.f32.mrb[0].mxu0
    %v2196 = vadd.f32 %v2155, %v2195
    %v2197 = vpop.f32.mrb[0].mxu0
    %v2198 = vpop.f32.mrb[0].mxu0
    %v2199 = vadd.f32 %v2158, %v2198
    %v2200 = vpop.f32.mrb[0].mxu0
    %2201 = vdwg.mxu0
    %2202 = vmatprep.subr.bf16.mxu0 0
    %2203 = vmatpush1.bf16.msra.mxu0 %v1543
    %2204 = vmatprep.subr.bf16.mxu0 0
    %2205 = vmatpush1.bf16.msra.mxu0 %v1544
    %2206 = vmatprep.subr.bf16.mxu0 0
    %2207 = vmatpush1.bf16.msra.mxu0 %v1545
    %2208 = vmatprep.subr.bf16.mxu0 0
    %2209 = vmatpush1.bf16.msra.mxu0 %v1546
    %2210 = vmatprep.subr.bf16.mxu0 0
    %2211 = vmatpush1.bf16.msra.mxu0 %v1547
    %2212 = vmatprep.subr.bf16.mxu0 0
    %2213 = vmatpush1.bf16.msra.mxu0 %v1548
    %2214 = vmatprep.subr.bf16.mxu0 0
    %2215 = vmatpush1.bf16.msra.mxu0 %v1549
    %2216 = vmatprep.subr.bf16.mxu0 0
    %2217 = vmatpush1.bf16.msra.mxu0 %v1550
    %2218 = vmatprep.subr.bf16.mxu0 0
    %2219 = vmatpush1.bf16.msra.mxu0 %v1551
    %2220 = vmatprep.subr.bf16.mxu0 0
    %2221 = vmatpush1.bf16.msra.mxu0 %v1552
    %2222 = vmatprep.subr.bf16.mxu0 0
    %2223 = vmatpush1.bf16.msra.mxu0 %v1553
    %2224 = vmatprep.subr.bf16.mxu0 0
    %2225 = vmatpush1.bf16.msra.mxu0 %v1554
    %2226 = vmatprep.subr.bf16.mxu0 0
    %2227 = vmatpush1.bf16.msra.mxu0 %v1555
    %2228 = vmatprep.subr.bf16.mxu0 0
    %2229 = vmatpush1.bf16.msra.mxu0 %v1556
    %2230 = vmatprep.subr.bf16.mxu0 0
    %2231 = vmatpush1.bf16.msra.mxu0 %v1557
    %2232 = vmatprep.subr.bf16.mxu0 0
    %2233 = vmatpush1.bf16.msra.mxu0 %v1558
    %2234 = vmatprep.mubr.bf16.mxu0 %v574
    %2235 = vmatmul.mubr.bf16.gmra.mrb[0].mxu0 %v573
    %v2236 = vpop.f32.mrb[0].mxu0
    %v2237 = vadd.f32 %v2196, %v2236
    %v2238 = vpop.f32.mrb[0].mxu0
    %v2239 = vpop.f32.mrb[0].mxu0
    %v2240 = vadd.f32 %v2199, %v2239
    %v2241 = vpop.f32.mrb[0].mxu0
    %2242 = vdwg.mxu0
    %v2243 = vadd.f32 %v69, %v2237
    %v2244 = vadd.f32 %v70, %v2240
    %2245 = vst [vmem:[#allocation2] sm:$0xff] %v2243
    %2246 = vst [vmem:[#allocation2 + $0x8] sm:$0xff] %v2244
    // Predicated region
    $region38: #{tpu_custom_call.1} parent=1 // pred_check
      %p2247 = pneg %p63
    $region39: #{tpu_custom_call.1} parent=1 // pred_check_branch
      %2249 = sbr.rel (%p2247) target = $region41
    $region40: #{tpu_custom_call.1} parent=1 // pred_region
      %v2250 = vld [vmem:[#allocation2] sm:$0xff]
      %v2251 = vld [vmem:[#allocation2 + $0x8] sm:$0xff]
      %v2252 = vld [vmem:[%s2] sm:$0x1]
      %v2254 = vlaneseq
      %v2255 = vshrl.u32 %v2254, 7
      %v2256 = vsub.s32 0, %v2255
      %v2257 = vrot.slane %v2252, %v2256
      %v2259 = vadd.f32 %v2250, %v2257
      %v2260 = vadd.f32 %v2251, %v2257
      %v2261 = vmax.f32 %v2259, 0.0
      %v2262 = vmax.f32 %v2260, 0.0
      %v2263 = vpack.c.bf16 %v2262, %v2261
      %v2264 = vld [vmem:[#allocation8] sm:$0xf]
      %v2265 = vld [vmem:[#allocation8 + $0x4] sm:$0xf]
      %v2266 = vld [vmem:[#allocation8 + $0x8] sm:$0xf]
      %v2267 = vld [vmem:[#allocation8 + $0xc] sm:$0xf]
      %v2268 = vld [vmem:[#allocation8 + $0x10] sm:$0xf]
      %v2269 = vld [vmem:[#allocation8 + $0x14] sm:$0xf]
      %v2270 = vld [vmem:[#allocation8 + $0x18] sm:$0xf]
      %v2271 = vld [vmem:[#allocation8 + $0x1c] sm:$0xf]
      %v2272 = vld [vmem:[#allocation8 + $0x20] sm:$0xf]
      %v2273 = vld [vmem:[#allocation8 + $0x24] sm:$0xf]
      %v2274 = vld [vmem:[#allocation8 + $0x28] sm:$0xf]
      %v2275 = vld [vmem:[#allocation8 + $0x2c] sm:$0xf]
      %v2276 = vld [vmem:[#allocation8 + $0x30] sm:$0xf]
      %v2277 = vld [vmem:[#allocation8 + $0x34] sm:$0xf]
      %v2278 = vld [vmem:[#allocation8 + $0x38] sm:$0xf]
      %v2279 = vld [vmem:[#allocation8 + $0x3c] sm:$0xf]
      %v2280 = vld [vmem:[%s4] sm:$0x1]
      %v2282 = vlaneseq
      %v2283 = vshrl.u32 %v2282, 7
      %v2284 = vsub.s32 0, %v2283
      %v2285 = vrot.slane %v2280, %v2284
      %v2303 = vunpack.c.l.b16 %v2264
      %v2304 = vunpack.c.l.b16 %v2265
      %v2305 = vunpack.c.l.b16 %v2266
      %v2306 = vunpack.c.l.b16 %v2267
      %v2307 = vunpack.c.l.b16 %v2268
      %v2308 = vunpack.c.l.b16 %v2269
      %v2309 = vunpack.c.l.b16 %v2270
      %v2310 = vunpack.c.l.b16 %v2271
      %v2311 = vunpack.c.l.b16 %v2272
      %v2312 = vunpack.c.l.b16 %v2273
      %v2313 = vunpack.c.l.b16 %v2274
      %v2314 = vunpack.c.l.b16 %v2275
      %v2315 = vunpack.c.l.b16 %v2276
      %v2316 = vunpack.c.l.b16 %v2277
      %v2317 = vunpack.c.l.b16 %v2278
      %v2318 = vunpack.c.l.b16 %v2279
      %v2319 = vpack.c.b16 %v2304, %v2303
      %v2320 = vpack.c.b16 %v2306, %v2305
      %v2321 = vpack.c.b16 %v2308, %v2307
      %v2322 = vpack.c.b16 %v2310, %v2309
      %v2323 = vpack.c.b16 %v2312, %v2311
      %v2324 = vpack.c.b16 %v2314, %v2313
      %v2325 = vpack.c.b16 %v2316, %v2315
      %v2326 = vpack.c.b16 %v2318, %v2317
      %2335 = vmatprep.subr.bf16.mxu0 0
      %2336 = vmatpush1.bf16.msra.mxu0 %v2319
      %2337 = vmatprep.subr.bf16.mxu0 0
      %2338 = vmatpush1.bf16.msra.mxu0 %v2320
      %2339 = vmatprep.subr.bf16.mxu0 0
      %2340 = vmatpush1.bf16.msra.mxu0 %v2321
      %2341 = vmatprep.subr.bf16.mxu0 0
      %2342 = vmatpush1.bf16.msra.mxu0 %v2322
      %2343 = vmatprep.subr.bf16.mxu0 0
      %2344 = vmatpush1.bf16.msra.mxu0 %v2323
      %2345 = vmatprep.subr.bf16.mxu0 0
      %2346 = vmatpush1.bf16.msra.mxu0 %v2324
      %2347 = vmatprep.subr.bf16.mxu0 0
      %2348 = vmatpush1.bf16.msra.mxu0 %v2325
      %2349 = vmatprep.subr.bf16.mxu0 0
      %2350 = vmatpush1.bf16.msra.mxu0 %v2326
      %2351 = vmatprep.subr.bf16.mxu0 0
      %2352 = vmatpush1.bf16.msra.mxu0 0
      %2353 = vmatprep.subr.bf16.mxu0 0
      %2354 = vmatpush1.bf16.msra.mxu0 0
      %2355 = vmatprep.subr.bf16.mxu0 0
      %2356 = vmatpush1.bf16.msra.mxu0 0
      %2357 = vmatprep.subr.bf16.mxu0 0
      %2358 = vmatpush1.bf16.msra.mxu0 0
      %2359 = vmatprep.subr.bf16.mxu0 0
      %2360 = vmatpush1.bf16.msra.mxu0 0
      %2361 = vmatprep.subr.bf16.mxu0 0
      %2362 = vmatpush1.bf16.msra.mxu0 0
      %2363 = vmatprep.subr.bf16.mxu0 0
      %2364 = vmatpush1.bf16.msra.mxu0 0
      %2365 = vmatprep.subr.bf16.mxu0 0
      %2366 = vmatpush1.bf16.msra.mxu0 0
      %2367 = vmatprep.mubr.bf16.mxu0 0
      %2368 = vmatmul.mubr.bf16.gmra.mrb[0].mxu0 %v2263
      %v2369 = vpop.f32.mrb[0].mxu0
      %v2370 = vadd.f32 %v2285, %v2369
      %v2371 = vpop.f32.mrb[0].mxu0
      %v2372 = vpop.f32.mrb[0].mxu0
      %v2373 = vadd.f32 %v2285, %v2372
      %v2374 = vpop.f32.mrb[0].mxu0
      %2375 = vdwg.mxu0
      %2378 = vrot.lane.b32.xlu0 %v2370, 1
      %v2379 = vpop.permute.xlu0 %2378
      %2380 = vrot.lane.b32.xlu0 %v2373, 1
      %v2381 = vpop.permute.xlu0 %2380
      %vm2384 = vcmp.gt.f32.partialorder %v2370, %v2379
      %vm2385 = vcmp.gt.f32.partialorder %v2373, %v2381
      %v2386 = vsel %vm2384, 1, 0
      %v2387 = vsel %vm2385, 1, 0
      %v2388 = vmul.f32 %v2370, 100.0
      %v2389 = vmul.f32 %v2373, 100.0
      %v2390 = vcvt.f32.s32.ties.to.even %v2388
      %v2391 = vcvt.f32.s32.ties.to.even %v2389
      %v2392 = vlaneseq
      %v2393 = vand.u32 %v2392, 127
      %vm2394 = vcmp.eq.s32.totalorder %v2393, 0
      %vm2395 = vcmp.eq.s32.totalorder %v2393, 1
      %2396 = vset.pattern.permute.xlu0 2
      %2397 = vperm.xlu0 %2396, %v2390
      %v2398 = vpop.permute.xlu0 %2397
      %2399 = vset.pattern.permute.xlu0 2
      %2400 = vperm.xlu0 %2399, %v2391
      %v2401 = vpop.permute.xlu0 %2400
      %v2402 = vsel %vm2395, %v2398, 0
      %v2403 = vsel %vm2395, %v2401, 0
      %2404 = vset.pattern.permute.xlu0 1
      %2405 = vperm.xlu0 %2404, %v2386
      %v2406 = vpop.permute.xlu0 %2405
      %2407 = vset.pattern.permute.xlu0 1
      %2408 = vperm.xlu0 %2407, %v2387
      %v2409 = vpop.permute.xlu0 %2408
      %v2410 = vsel %vm2394, %v2406, %v2402
      %v2411 = vsel %vm2394, %v2409, %v2403
      %2412 = vst [vmem:[#allocation9] sm:$0xff] %v2410
      %2413 = vst [vmem:[#allocation9 + $0x8] sm:$0xff] %v2411
    $region41: #{tpu_custom_call.1} parent=1 // pred_fallthru
      _
    // Predicated region
    $region42: #{tpu_custom_call.1} parent=1 // pred_check
      _
    $region43: #{tpu_custom_call.1} parent=1 // pred_check_branch
      %2415 = sbr.rel (0) target = $region45
    $region44: #{tpu_custom_call.1} parent=1 // pred_region
      %s2417 = ssub.s32 256, 256
      %2418 = vsyncadd [#allocation5], %s2417
      %s2419 = sshll.u32 [#allocation9], 4
      %s2420 = int_to_ptr.vmem [resolvable:$true] %s2419
      %2425 = dma.vmem_to_hbm [thread:$0]  %s2420, 256, %s5, [#allocation5], 128, 128, 8
    $region45: #{tpu_custom_call.1} parent=1 // pred_fallthru
      _
    // Predicated region
    $region46: #{tpu_custom_call.1} parent=1 // pred_check
      _
    $region47: #{tpu_custom_call.1} parent=1 // pred_check_branch
      %2427 = sbr.rel (0) target = $region49
    $region48: #{tpu_custom_call.1} parent=1 // pred_region
      %2428 = dma.done [#allocation5], 256
    $region49: #{tpu_custom_call.1} parent=1 // pred_fallthru
      _
    %2429 = vsyncpa [#allocation4], 1
    %2430 = vsyncpa [#allocation7], 1
    %2431 = vsyncpa [#allocation5], 1

</llo_original>
